<compile_context>
chip_gen: v6e
topology: v6e:2x2x1
jax: 0.10.0
libtpu: 0.0.40
codegen_flags: <defaults>
</compile_context>

<pallas_src>
import functools

import jax
import jax.numpy as jnp
from jax.experimental import pallas as pl
from jax.experimental.pallas import tpu as pltpu


# ------------------------------------------------------------------ helpers --
def _erf_f32(x):
    """f32 rational approximation of erf (same family XLA uses for f32 erf)."""
    x = jnp.clip(x, -4.0, 4.0)
    x2 = x * x
    alpha = jnp.float32(-2.72614225801306e-10)
    alpha = alpha * x2 + jnp.float32(2.77068142495902e-08)
    alpha = alpha * x2 + jnp.float32(-2.10102402082508e-06)
    alpha = alpha * x2 + jnp.float32(-5.69250639462346e-05)
    alpha = alpha * x2 + jnp.float32(-7.34990630326855e-04)
    alpha = alpha * x2 + jnp.float32(-2.95459980854025e-03)
    alpha = alpha * x2 + jnp.float32(-1.60960333262415e-02)
    alpha = alpha * x
    beta = jnp.float32(-1.45660718464996e-05)
    beta = beta * x2 + jnp.float32(-2.13374055278905e-04)
    beta = beta * x2 + jnp.float32(-1.68282697438203e-03)
    beta = beta * x2 + jnp.float32(-7.37332916720468e-03)
    beta = beta * x2 + jnp.float32(-1.42647390514189e-02)
    # alpha / beta with the divide moved to the EUP reciprocal + one Newton step
    # (relative error ~1e-7, far below the block's bf16-matmul tolerance).
    r = pl.reciprocal(beta, approx=True)
    r = r * (jnp.float32(2.0) - beta * r)
    return alpha * r


def _gelu_exact(x):
    # nn.GELU default: 0.5 * x * (1 + erf(x / sqrt(2)))
    return 0.5 * x * (1.0 + _erf_f32(x * jnp.float32(0.7071067811865476)))


# ------------------------------------------------------------------- kernel --
def vit_block_kernel(x_ref,
                     ln1w_ref, ln1b_ref,
                     wq_ref, wkt_ref, wvt_ref, wproj_ref, bproj_ref,
                     ln2w_ref, ln2b_ref,
                     w1_ref, b1_ref, w2_ref, b2_ref,
                     o_ref,
                     *, eps):
    f32 = jnp.float32
    bf16 = jnp.bfloat16

    x = x_ref[...]                               # (N, C) f32, batch dim squeezed
    N, C = x.shape
    H, _, hd = wq_ref.shape

    def layernorm(v, g, b):
        mu = jnp.mean(v, axis=-1, keepdims=True)
        var = jnp.mean((v - mu) ** 2, axis=-1, keepdims=True)   # biased, like torch
        return (v - mu) * jax.lax.rsqrt(var + eps) * g + b

    # ---- attention branch -------------------------------------------------
    h = layernorm(x, ln1w_ref[...], ln1b_ref[...])              # (N, C) f32
    hb = h.astype(bf16)                                         # (N, C)
    hTb = h.T.astype(bf16)                                      # (C, N) single 2-D transpose

    # Q head-major via broadcast + batched dot (scale pre-folded into wq weight).
    qh = jax.lax.dot_general(jnp.broadcast_to(hb, (H, N, C)), wq_ref[...],
                             (((2,), (1,)), ((0,), (0,))),
                             preferred_element_type=f32)        # (H, N, hd)
    qhb = qh.astype(bf16)

    # K / V lane-dense in transposed orientation: (C,C) x (C,N) -> (C,N).
    # Full-lane output (N) and C-deep contraction on the MXU.
    kT = jnp.dot(wkt_ref[...], hTb, preferred_element_type=f32)  # (C, N)
    vT = jnp.dot(wvt_ref[...], hTb, preferred_element_type=f32)  # (C, N)
    # Head-major views are leading-dim splits (tile aligned: hd % 8 == 0 for real ViT sizes).
    khTb = kT.reshape(H, hd, N).astype(bf16)                     # (H, hd, Nk)
    vhTb = vT.reshape(H, hd, N).astype(bf16)                     # (H, hd, Nk)

    # scores: standard batched matmul over heads -> (H, Nq, Nk)
    s = jax.lax.dot_general(qhb, khTb, (((2,), (1,)), ((0,), (0,))),
                            preferred_element_type=f32)
    s = s - jnp.max(s, axis=-1, keepdims=True)
    p = jnp.exp(s)
    p = p * pl.reciprocal(jnp.sum(p, axis=-1, keepdims=True), approx=True)
    pb = p.astype(bf16)

    # PV transposed: output lane dim is Nq (full lanes) -> (H, hd, Nq)
    o_t = jax.lax.dot_general(vhTb, pb, (((2,), (2,)), ((0,), (0,))),
                              preferred_element_type=f32)
    # Collapse heads (leading-dim merge, == concat over heads) and transpose back once.
    o_nc = o_t.reshape(C, N).T                                   # (Nq, C) f32

    # Single lane-dense output projection: C-deep contraction, C-wide output lanes.
    attn = jnp.dot(o_nc.astype(bf16), wproj_ref[...],
                   preferred_element_type=f32) + bproj_ref[...]  # (Nq, C)
    x1 = x + attn                                                # residual 1 (drop_path = id)

    # ---- MLP branch --------------------------------------------------------
    h2 = layernorm(x1, ln2w_ref[...], ln2b_ref[...])
    mid = jnp.dot(h2.astype(bf16), w1_ref[...],
                  preferred_element_type=f32) + b1_ref[...]
    mid = _gelu_exact(mid)
    mlp = jnp.dot(mid.astype(bf16), w2_ref[...],
                  preferred_element_type=f32) + b2_ref[...]

    o_ref[...] = (x1 + mlp).astype(o_ref.dtype)                  # residual 2


# ------------------------------------------------------------------ wrapper --
def _vmem_limit_bytes():
    """Per-generation scoped-VMEM budget: tight on v7x (64 MiB), roomy on v5e/v6e (128 MiB)."""
    try:
        kind = jax.devices()[0].device_kind.lower()
    except Exception:
        kind = ""
    if "v7" in kind:
        return 48 * 1024 * 1024
    if "v5" in kind or "v6" in kind:
        return 96 * 1024 * 1024
    return None                                   # unknown generation: keep compiler default


def vit_block(x, params, num_heads, eps=1e-5):
    B, N, C = x.shape
    hd = C // num_heads
    hidden = params["w1"].shape[1]
    scale = hd ** -0.5
    cdt = jnp.bfloat16

    # Weight prep (done once, outside the kernel).
    # qkv output columns are ordered (3, H, hd) to match the PyTorch reshape:
    #   cols [0,C) = Q (head-major), [C,2C) = K, [2C,3C) = V.
    wqkv = params["wqkv"]                                        # (C, 3C), (in, out)
    wq_hm = (wqkv[:, 0 * C:1 * C] * scale).reshape(C, num_heads, hd)
    wq_hm = wq_hm.transpose(1, 0, 2).astype(cdt)                 # (H, C, hd), scale folded in
    wk_t = wqkv[:, 1 * C:2 * C].T.astype(cdt)                    # (C_out head-major, C_in)
    wv_t = wqkv[:, 2 * C:3 * C].T.astype(cdt)                    # (C_out head-major, C_in)
    wproj = params["wproj"].astype(cdt)                          # (C in, head-major rows; C out)
    w1 = params["w1"].astype(cdt)                                # (C, hidden)
    w2 = params["w2"].astype(cdt)                                # (hidden, C)

    kernel = functools.partial(vit_block_kernel, eps=eps)

    def full(shape):
        n = len(shape)
        return pl.BlockSpec(shape, lambda b: (0,) * n)           # grid-invariant, VMEM-resident

    # TODO(synk): on v7x, single-buffer the grid-invariant weight specs and require B % 2 == 0
    # so both TensorCores get work; for N >> 197 switch the score/PV stage to a query-tiled
    # online-softmax (flash-style) loop instead of materializing (H, N, N) per batch element.
    return pl.pallas_call(
        kernel,
        out_shape=jax.ShapeDtypeStruct((B, N, C), x.dtype),
        grid=(B,),
        in_specs=[
            pl.BlockSpec((None, N, C), lambda b: (b, 0, 0)),     # x, batch dim squeezed
            full((1, C)), full((1, C)),                          # ln1 weight/bias
            full((num_heads, C, hd)),                            # wq (head-major, pre-scaled)
            full((C, C)),                                        # wk^T
            full((C, C)),                                        # wv^T
            full((C, C)), full((1, C)),                          # proj weight/bias
            full((1, C)), full((1, C)),                          # ln2 weight/bias
            full((C, hidden)), full((1, hidden)),                # fc1 weight/bias
            full((hidden, C)), full((1, C)),                     # fc2 weight/bias
        ],
        out_specs=pl.BlockSpec((None, N, C), lambda b: (b, 0, 0)),
        compiler_params=pltpu.CompilerParams(
            dimension_semantics=("parallel",),       # batch is embarrassingly parallel
            vmem_limit_bytes=_vmem_limit_bytes(),
        ),
    )(x,
      params["ln1_w"], params["ln1_b"],
      wq_hm, wk_t, wv_t, wproj, params["bproj"],
      params["ln2_w"], params["ln2_b"],
      w1, params["b1"], w2, params["b2"])


# ------------------------------------------------------------- JAX reference --
def reference_block(x, params, num_heads, eps=1e-5):
    def ln(v, g, b):
        mu = v.mean(-1, keepdims=True)
        var = ((v - mu) ** 2).mean(-1, keepdims=True)
        return (v - mu) / jnp.sqrt(var + eps) * g + b

    B, N, C = x.shape
    hd = C // num_heads
    scale = hd ** -0.5
    h = ln(x, params["ln1_w"], params["ln1_b"])
    qkv = (h @ params["wqkv"]).reshape(B, N, 3, num_heads, hd).transpose(2, 0, 3, 1, 4)
    q, k, v = qkv[0], qkv[1], qkv[2]
    attn = jnp.einsum("bhnd,bhmd->bhnm", q, k) * scale
    attn = jax.nn.softmax(attn, axis=-1)
    o = jnp.einsum("bhnm,bhmd->bhnd", attn, v).transpose(0, 2, 1, 3).reshape(B, N, C)
    o = o @ params["wproj"] + params["bproj"]
    x1 = x + o
    h2 = ln(x1, params["ln2_w"], params["ln2_b"])
    m = jax.nn.gelu(h2 @ params["w1"] + params["b1"], approximate=False)
    m = m @ params["w2"] + params["b2"]
    return x1 + m


# --------------------------------------------------------------------- main --
if __name__ == "__main__":
    B, N, C = 2, 8, 32
    num_heads = 4
    mlp_hidden = int(C * 4.0)

    key = jax.random.PRNGKey(0)
    ks = jax.random.split(key, 8)
    params = {
        "ln1_w": jnp.ones((1, C), jnp.float32),
        "ln1_b": jnp.zeros((1, C), jnp.float32),
        "wqkv": 0.02 * jax.random.normal(ks[0], (C, 3 * C), jnp.float32),
        "wproj": 0.02 * jax.random.normal(ks[1], (C, C), jnp.float32),
        "bproj": 0.02 * jax.random.normal(ks[2], (1, C), jnp.float32),
        "ln2_w": jnp.ones((1, C), jnp.float32),
        "ln2_b": jnp.zeros((1, C), jnp.float32),
        "w1": 0.02 * jax.random.normal(ks[3], (C, mlp_hidden), jnp.float32),
        "b1": 0.02 * jax.random.normal(ks[4], (1, mlp_hidden), jnp.float32),
        "w2": 0.02 * jax.random.normal(ks[5], (mlp_hidden, C), jnp.float32),
        "b2": 0.02 * jax.random.normal(ks[6], (1, C), jnp.float32),
    }
    x = jax.random.normal(ks[7], (B, N, C), jnp.float32)

    out = jax.block_until_ready(vit_block(x, params, num_heads))
    ref = jax.block_until_ready(reference_block(x, params, num_heads))

    assert out.shape == (B, N, C)
    assert jnp.all(jnp.isfinite(out))
    # bf16 matmul inputs (f32 accumulation) -> slightly looser tolerance than pure-f32.
    assert jnp.allclose(out, ref, atol=2e-2, rtol=2e-2), \
        f"max abs err {jnp.max(jnp.abs(out - ref))}"
    print("KERNEL_OK")
</pallas_src>

<mosaic_0001>
module attributes {stable_mosaic.version = 11 : i64} {
  func.func @vit_block_kernel(%arg0: i32, %arg1: memref<1x8x32xf32, #tpu.memory_space<vmem>>, %arg2: memref<1x32xf32, #tpu.memory_space<vmem>>, %arg3: memref<1x32xf32, #tpu.memory_space<vmem>>, %arg4: memref<4x32x8xbf16, #tpu.memory_space<vmem>>, %arg5: memref<32x32xbf16, #tpu.memory_space<vmem>>, %arg6: memref<32x32xbf16, #tpu.memory_space<vmem>>, %arg7: memref<32x32xbf16, #tpu.memory_space<vmem>>, %arg8: memref<1x32xf32, #tpu.memory_space<vmem>>, %arg9: memref<1x32xf32, #tpu.memory_space<vmem>>, %arg10: memref<1x32xf32, #tpu.memory_space<vmem>>, %arg11: memref<32x128xbf16, #tpu.memory_space<vmem>>, %arg12: memref<1x128xf32, #tpu.memory_space<vmem>>, %arg13: memref<128x32xbf16, #tpu.memory_space<vmem>>, %arg14: memref<1x32xf32, #tpu.memory_space<vmem>>, %arg15: memref<1x8x32xf32, #tpu.memory_space<vmem>>) attributes {dimension_semantics = [#tpu.dimension_semantics<parallel>], iteration_bounds = array<i64: 2>, scalar_prefetch = 0 : i64, scratch_operands = 0 : i64, tpu.core_type = #tpu.core_type<tc>, window_params = [{transform_indices = @transform_0, window_bounds = array<i64: 1, 8, 32>}, {pipeline_mode = #tpu.pipeline_mode<synchronous>, transform_indices = @transform_1, window_bounds = array<i64: 1, 32>}, {pipeline_mode = #tpu.pipeline_mode<synchronous>, transform_indices = @transform_2, window_bounds = array<i64: 1, 32>}, {pipeline_mode = #tpu.pipeline_mode<synchronous>, transform_indices = @transform_3, window_bounds = array<i64: 4, 32, 8>}, {pipeline_mode = #tpu.pipeline_mode<synchronous>, transform_indices = @transform_4, window_bounds = array<i64: 32, 32>}, {pipeline_mode = #tpu.pipeline_mode<synchronous>, transform_indices = @transform_5, window_bounds = array<i64: 32, 32>}, {pipeline_mode = #tpu.pipeline_mode<synchronous>, transform_indices = @transform_6, window_bounds = array<i64: 32, 32>}, {pipeline_mode = #tpu.pipeline_mode<synchronous>, transform_indices = @transform_7, window_bounds = array<i64: 1, 32>}, {pipeline_mode = #tpu.pipeline_mode<synchronous>, transform_indices = @transform_8, window_bounds = array<i64: 1, 32>}, {pipeline_mode = #tpu.pipeline_mode<synchronous>, transform_indices = @transform_9, window_bounds = array<i64: 1, 32>}, {pipeline_mode = #tpu.pipeline_mode<synchronous>, transform_indices = @transform_10, window_bounds = array<i64: 32, 128>}, {pipeline_mode = #tpu.pipeline_mode<synchronous>, transform_indices = @transform_11, window_bounds = array<i64: 1, 128>}, {pipeline_mode = #tpu.pipeline_mode<synchronous>, transform_indices = @transform_12, window_bounds = array<i64: 128, 32>}, {pipeline_mode = #tpu.pipeline_mode<synchronous>, transform_indices = @transform_13, window_bounds = array<i64: 1, 32>}, {transform_indices = @transform_14, window_bounds = array<i64: 1, 8, 32>}]} {
    %c0 = arith.constant 0 : index
    %c0_0 = arith.constant 0 : index
    %c0_1 = arith.constant 0 : index
    %0 = vector.load %arg1[%c0, %c0_0, %c0_1] : memref<1x8x32xf32, #tpu.memory_space<vmem>>, vector<1x8x32xf32>
    %1 = vector.shape_cast %0 : vector<1x8x32xf32> to vector<8x32xf32>
    %c0_2 = arith.constant 0 : index
    %c0_3 = arith.constant 0 : index
    %2 = vector.load %arg2[%c0_2, %c0_3] : memref<1x32xf32, #tpu.memory_space<vmem>>, vector<1x32xf32>
    %c0_4 = arith.constant 0 : index
    %c0_5 = arith.constant 0 : index
    %3 = vector.load %arg3[%c0_4, %c0_5] : memref<1x32xf32, #tpu.memory_space<vmem>>, vector<1x32xf32>
    %cst = arith.constant dense<0.000000e+00> : vector<8xf32>
    %4 = vector.multi_reduction <add>, %1, %cst [1] : vector<8x32xf32> to vector<8xf32>
    %5 = vector.shape_cast %4 : vector<8xf32> to vector<8x1xf32>
    %cst_6 = arith.constant 3.200000e+01 : f32
    %6 = vector.broadcast %cst_6 : f32 to vector<8x1xf32>
    %7 = arith.divf %5, %6 : vector<8x1xf32>
    %8 = vector.broadcast %7 : vector<8x1xf32> to vector<8x32xf32>
    %9 = arith.subf %1, %8 : vector<8x32xf32>
    %10 = arith.mulf %9, %9 : vector<8x32xf32>
    %cst_7 = arith.constant dense<0.000000e+00> : vector<8xf32>
    %11 = vector.multi_reduction <add>, %10, %cst_7 [1] : vector<8x32xf32> to vector<8xf32>
    %12 = vector.shape_cast %11 : vector<8xf32> to vector<8x1xf32>
    %cst_8 = arith.constant 3.200000e+01 : f32
    %13 = vector.broadcast %cst_8 : f32 to vector<8x1xf32>
    %14 = arith.divf %12, %13 : vector<8x1xf32>
    %15 = vector.broadcast %7 : vector<8x1xf32> to vector<8x32xf32>
    %16 = arith.subf %1, %15 : vector<8x32xf32>
    %cst_9 = arith.constant 9.99999974E-6 : f32
    %17 = vector.broadcast %cst_9 : f32 to vector<8x1xf32>
    %18 = arith.addf %14, %17 : vector<8x1xf32>
    %19 = math.rsqrt %18 : vector<8x1xf32>
    %20 = vector.broadcast %19 : vector<8x1xf32> to vector<8x32xf32>
    %21 = arith.mulf %16, %20 : vector<8x32xf32>
    %22 = vector.broadcast %2 : vector<1x32xf32> to vector<8x32xf32>
    %23 = arith.mulf %21, %22 : vector<8x32xf32>
    %24 = vector.broadcast %3 : vector<1x32xf32> to vector<8x32xf32>
    %25 = arith.addf %23, %24 : vector<8x32xf32>
    %26 = arith.truncf %25 : vector<8x32xf32> to vector<8x32xbf16>
    %27 = tpu.transpose %25, [1, 0] : vector<8x32xf32> -> vector<32x8xf32>
    %28 = arith.truncf %27 : vector<32x8xf32> to vector<32x8xbf16>
    %29 = vector.shape_cast %26 : vector<8x32xbf16> to vector<1x8x32xbf16>
    %30 = vector.broadcast %29 : vector<1x8x32xbf16> to vector<4x8x32xbf16>
    %c0_10 = arith.constant 0 : index
    %c0_11 = arith.constant 0 : index
    %c0_12 = arith.constant 0 : index
    %31 = vector.load %arg4[%c0_10, %c0_11, %c0_12] : memref<4x32x8xbf16, #tpu.memory_space<vmem>>, vector<4x32x8xbf16>
    %cst_13 = arith.constant dense<0.000000e+00> : vector<4x8x8xf32>
    %32 = tpu.matmul %30, %31, %cst_13 {dimension_numbers = #tpu.dot_dimension_numbers<[2], [1], [1], [2], [0, 0, 0, 1, 1, 2], [0], [0]>} : vector<4x8x32xbf16>, vector<4x32x8xbf16>, vector<4x8x8xf32> -> vector<4x8x8xf32>
    %33 = arith.truncf %32 : vector<4x8x8xf32> to vector<4x8x8xbf16>
    %c0_14 = arith.constant 0 : index
    %c0_15 = arith.constant 0 : index
    %34 = vector.load %arg5[%c0_14, %c0_15] : memref<32x32xbf16, #tpu.memory_space<vmem>>, vector<32x32xbf16>
    %cst_16 = arith.constant dense<0.000000e+00> : vector<32x8xf32>
    %35 = tpu.matmul %34, %28, %cst_16 {dimension_numbers = #tpu.dot_dimension_numbers<[1], [0], [0], [1], [0, 0, 1, 1], [], []>} : vector<32x32xbf16>, vector<32x8xbf16>, vector<32x8xf32> -> vector<32x8xf32>
    %c0_17 = arith.constant 0 : index
    %c0_18 = arith.constant 0 : index
    %36 = vector.load %arg6[%c0_17, %c0_18] : memref<32x32xbf16, #tpu.memory_space<vmem>>, vector<32x32xbf16>
    %cst_19 = arith.constant dense<0.000000e+00> : vector<32x8xf32>
    %37 = tpu.matmul %36, %28, %cst_19 {dimension_numbers = #tpu.dot_dimension_numbers<[1], [0], [0], [1], [0, 0, 1, 1], [], []>} : vector<32x32xbf16>, vector<32x8xbf16>, vector<32x8xf32> -> vector<32x8xf32>
    %38 = vector.shape_cast %35 : vector<32x8xf32> to vector<4x8x8xf32>
    %39 = arith.truncf %38 : vector<4x8x8xf32> to vector<4x8x8xbf16>
    %40 = vector.shape_cast %37 : vector<32x8xf32> to vector<4x8x8xf32>
    %41 = arith.truncf %40 : vector<4x8x8xf32> to vector<4x8x8xbf16>
    %cst_20 = arith.constant dense<0.000000e+00> : vector<4x8x8xf32>
    %42 = tpu.matmul %33, %39, %cst_20 {dimension_numbers = #tpu.dot_dimension_numbers<[2], [1], [1], [2], [0, 0, 0, 1, 1, 2], [0], [0]>} : vector<4x8x8xbf16>, vector<4x8x8xbf16>, vector<4x8x8xf32> -> vector<4x8x8xf32>
    %cst_21 = arith.constant dense<0xFF800000> : vector<4x8xf32>
    %43 = vector.multi_reduction <maximumf>, %42, %cst_21 [2] : vector<4x8x8xf32> to vector<4x8xf32>
    %44 = vector.shape_cast %43 : vector<4x8xf32> to vector<4x8x1xf32>
    %45 = vector.broadcast %44 : vector<4x8x1xf32> to vector<4x8x8xf32>
    %46 = arith.subf %42, %45 : vector<4x8x8xf32>
    %47 = math.exp %46 : vector<4x8x8xf32>
    %cst_22 = arith.constant dense<0.000000e+00> : vector<4x8xf32>
    %48 = vector.multi_reduction <add>, %47, %cst_22 [2] : vector<4x8x8xf32> to vector<4x8xf32>
    %49 = vector.shape_cast %48 : vector<4x8xf32> to vector<4x8x1xf32>
    %50 = tpu.reciprocal %49 {approx = true} : vector<4x8x1xf32> -> vector<4x8x1xf32>
    %51 = vector.broadcast %50 : vector<4x8x1xf32> to vector<4x8x8xf32>
    %52 = arith.mulf %47, %51 : vector<4x8x8xf32>
    %53 = arith.truncf %52 : vector<4x8x8xf32> to vector<4x8x8xbf16>
    %cst_23 = arith.constant dense<0.000000e+00> : vector<4x8x8xf32>
    %54 = tpu.matmul %41, %53, %cst_23 {dimension_numbers = #tpu.dot_dimension_numbers<[2], [2], [1], [1], [0, 0, 0, 1, 1, 1], [0], [0]>} : vector<4x8x8xbf16>, vector<4x8x8xbf16>, vector<4x8x8xf32> -> vector<4x8x8xf32>
    %55 = vector.shape_cast %54 : vector<4x8x8xf32> to vector<32x8xf32>
    %56 = tpu.transpose %55, [1, 0] : vector<32x8xf32> -> vector<8x32xf32>
    %57 = arith.truncf %56 : vector<8x32xf32> to vector<8x32xbf16>
    %c0_24 = arith.constant 0 : index
    %c0_25 = arith.constant 0 : index
    %58 = vector.load %arg7[%c0_24, %c0_25] : memref<32x32xbf16, #tpu.memory_space<vmem>>, vector<32x32xbf16>
    %cst_26 = arith.constant dense<0.000000e+00> : vector<8x32xf32>
    %59 = tpu.matmul %57, %58, %cst_26 {dimension_numbers = #tpu.dot_dimension_numbers<[1], [0], [0], [1], [0, 0, 1, 1], [], []>} : vector<8x32xbf16>, vector<32x32xbf16>, vector<8x32xf32> -> vector<8x32xf32>
    %c0_27 = arith.constant 0 : index
    %c0_28 = arith.constant 0 : index
    %60 = vector.load %arg8[%c0_27, %c0_28] : memref<1x32xf32, #tpu.memory_space<vmem>>, vector<1x32xf32>
    %61 = vector.broadcast %60 : vector<1x32xf32> to vector<8x32xf32>
    %62 = arith.addf %59, %61 : vector<8x32xf32>
    %63 = arith.addf %1, %62 : vector<8x32xf32>
    %c0_29 = arith.constant 0 : index
    %c0_30 = arith.constant 0 : index
    %64 = vector.load %arg9[%c0_29, %c0_30] : memref<1x32xf32, #tpu.memory_space<vmem>>, vector<1x32xf32>
    %c0_31 = arith.constant 0 : index
    %c0_32 = arith.constant 0 : index
    %65 = vector.load %arg10[%c0_31, %c0_32] : memref<1x32xf32, #tpu.memory_space<vmem>>, vector<1x32xf32>
    %cst_33 = arith.constant dense<0.000000e+00> : vector<8xf32>
    %66 = vector.multi_reduction <add>, %63, %cst_33 [1] : vector<8x32xf32> to vector<8xf32>
    %67 = vector.shape_cast %66 : vector<8xf32> to vector<8x1xf32>
    %cst_34 = arith.constant 3.200000e+01 : f32
    %68 = vector.broadcast %cst_34 : f32 to vector<8x1xf32>
    %69 = arith.divf %67, %68 : vector<8x1xf32>
    %70 = vector.broadcast %69 : vector<8x1xf32> to vector<8x32xf32>
    %71 = arith.subf %63, %70 : vector<8x32xf32>
    %72 = arith.mulf %71, %71 : vector<8x32xf32>
    %cst_35 = arith.constant dense<0.000000e+00> : vector<8xf32>
    %73 = vector.multi_reduction <add>, %72, %cst_35 [1] : vector<8x32xf32> to vector<8xf32>
    %74 = vector.shape_cast %73 : vector<8xf32> to vector<8x1xf32>
    %cst_36 = arith.constant 3.200000e+01 : f32
    %75 = vector.broadcast %cst_36 : f32 to vector<8x1xf32>
    %76 = arith.divf %74, %75 : vector<8x1xf32>
    %77 = vector.broadcast %69 : vector<8x1xf32> to vector<8x32xf32>
    %78 = arith.subf %63, %77 : vector<8x32xf32>
    %cst_37 = arith.constant 9.99999974E-6 : f32
    %79 = vector.broadcast %cst_37 : f32 to vector<8x1xf32>
    %80 = arith.addf %76, %79 : vector<8x1xf32>
    %81 = math.rsqrt %80 : vector<8x1xf32>
    %82 = vector.broadcast %81 : vector<8x1xf32> to vector<8x32xf32>
    %83 = arith.mulf %78, %82 : vector<8x32xf32>
    %84 = vector.broadcast %64 : vector<1x32xf32> to vector<8x32xf32>
    %85 = arith.mulf %83, %84 : vector<8x32xf32>
    %86 = vector.broadcast %65 : vector<1x32xf32> to vector<8x32xf32>
    %87 = arith.addf %85, %86 : vector<8x32xf32>
    %88 = arith.truncf %87 : vector<8x32xf32> to vector<8x32xbf16>
    %c0_38 = arith.constant 0 : index
    %c0_39 = arith.constant 0 : index
    %89 = vector.load %arg11[%c0_38, %c0_39] : memref<32x128xbf16, #tpu.memory_space<vmem>>, vector<32x128xbf16>
    %cst_40 = arith.constant dense<0.000000e+00> : vector<8x128xf32>
    %90 = tpu.matmul %88, %89, %cst_40 {dimension_numbers = #tpu.dot_dimension_numbers<[1], [0], [0], [1], [0, 0, 1, 1], [], []>} : vector<8x32xbf16>, vector<32x128xbf16>, vector<8x128xf32> -> vector<8x128xf32>
    %c0_41 = arith.constant 0 : index
    %c0_42 = arith.constant 0 : index
    %91 = vector.load %arg12[%c0_41, %c0_42] : memref<1x128xf32, #tpu.memory_space<vmem>>, vector<1x128xf32>
    %92 = vector.broadcast %91 : vector<1x128xf32> to vector<8x128xf32>
    %93 = arith.addf %90, %92 : vector<8x128xf32>
    %cst_43 = arith.constant 5.000000e-01 : f32
    %94 = vector.broadcast %cst_43 : f32 to vector<8x128xf32>
    %95 = arith.mulf %94, %93 : vector<8x128xf32>
    %cst_44 = arith.constant 0.707106769 : f32
    %96 = vector.broadcast %cst_44 : f32 to vector<8x128xf32>
    %97 = arith.mulf %93, %96 : vector<8x128xf32>
    %cst_45 = arith.constant -4.000000e+00 : f32
    %cst_46 = arith.constant 4.000000e+00 : f32
    %98 = vector.broadcast %cst_45 : f32 to vector<8x128xf32>
    %99 = arith.maximumf %98, %97 : vector<8x128xf32>
    %100 = vector.broadcast %cst_46 : f32 to vector<8x128xf32>
    %101 = arith.minimumf %100, %99 : vector<8x128xf32>
    %102 = arith.mulf %101, %101 : vector<8x128xf32>
    %cst_47 = arith.constant -2.72614237E-10 : f32
    %103 = vector.broadcast %cst_47 : f32 to vector<8x128xf32>
    %104 = arith.mulf %103, %102 : vector<8x128xf32>
    %cst_48 = arith.constant 2.77068146E-8 : f32
    %105 = vector.broadcast %cst_48 : f32 to vector<8x128xf32>
    %106 = arith.addf %104, %105 : vector<8x128xf32>
    %107 = arith.mulf %106, %102 : vector<8x128xf32>
    %cst_49 = arith.constant -2.10102394E-6 : f32
    %108 = vector.broadcast %cst_49 : f32 to vector<8x128xf32>
    %109 = arith.addf %107, %108 : vector<8x128xf32>
    %110 = arith.mulf %109, %102 : vector<8x128xf32>
    %cst_50 = arith.constant -5.69250624E-5 : f32
    %111 = vector.broadcast %cst_50 : f32 to vector<8x128xf32>
    %112 = arith.addf %110, %111 : vector<8x128xf32>
    %113 = arith.mulf %112, %102 : vector<8x128xf32>
    %cst_51 = arith.constant -7.34990637E-4 : f32
    %114 = vector.broadcast %cst_51 : f32 to vector<8x128xf32>
    %115 = arith.addf %113, %114 : vector<8x128xf32>
    %116 = arith.mulf %115, %102 : vector<8x128xf32>
    %cst_52 = arith.constant -2.954600e-03 : f32
    %117 = vector.broadcast %cst_52 : f32 to vector<8x128xf32>
    %118 = arith.addf %116, %117 : vector<8x128xf32>
    %119 = arith.mulf %118, %102 : vector<8x128xf32>
    %cst_53 = arith.constant -0.0160960332 : f32
    %120 = vector.broadcast %cst_53 : f32 to vector<8x128xf32>
    %121 = arith.addf %119, %120 : vector<8x128xf32>
    %122 = arith.mulf %121, %101 : vector<8x128xf32>
    %cst_54 = arith.constant -1.45660715E-5 : f32
    %123 = vector.broadcast %cst_54 : f32 to vector<8x128xf32>
    %124 = arith.mulf %123, %102 : vector<8x128xf32>
    %cst_55 = arith.constant -2.13374049E-4 : f32
    %125 = vector.broadcast %cst_55 : f32 to vector<8x128xf32>
    %126 = arith.addf %124, %125 : vector<8x128xf32>
    %127 = arith.mulf %126, %102 : vector<8x128xf32>
    %cst_56 = arith.constant -0.00168282702 : f32
    %128 = vector.broadcast %cst_56 : f32 to vector<8x128xf32>
    %129 = arith.addf %127, %128 : vector<8x128xf32>
    %130 = arith.mulf %129, %102 : vector<8x128xf32>
    %cst_57 = arith.constant -0.00737332925 : f32
    %131 = vector.broadcast %cst_57 : f32 to vector<8x128xf32>
    %132 = arith.addf %130, %131 : vector<8x128xf32>
    %133 = arith.mulf %132, %102 : vector<8x128xf32>
    %cst_58 = arith.constant -0.0142647391 : f32
    %134 = vector.broadcast %cst_58 : f32 to vector<8x128xf32>
    %135 = arith.addf %133, %134 : vector<8x128xf32>
    %136 = tpu.reciprocal %135 {approx = true} : vector<8x128xf32> -> vector<8x128xf32>
    %137 = arith.mulf %135, %136 : vector<8x128xf32>
    %cst_59 = arith.constant 2.000000e+00 : f32
    %138 = vector.broadcast %cst_59 : f32 to vector<8x128xf32>
    %139 = arith.subf %138, %137 : vector<8x128xf32>
    %140 = arith.mulf %136, %139 : vector<8x128xf32>
    %141 = arith.mulf %122, %140 : vector<8x128xf32>
    %cst_60 = arith.constant 1.000000e+00 : f32
    %142 = vector.broadcast %cst_60 : f32 to vector<8x128xf32>
    %143 = arith.addf %142, %141 : vector<8x128xf32>
    %144 = arith.mulf %95, %143 : vector<8x128xf32>
    %145 = arith.truncf %144 : vector<8x128xf32> to vector<8x128xbf16>
    %c0_61 = arith.constant 0 : index
    %c0_62 = arith.constant 0 : index
    %146 = vector.load %arg13[%c0_61, %c0_62] : memref<128x32xbf16, #tpu.memory_space<vmem>>, vector<128x32xbf16>
    %cst_63 = arith.constant dense<0.000000e+00> : vector<8x32xf32>
    %147 = tpu.matmul %145, %146, %cst_63 {dimension_numbers = #tpu.dot_dimension_numbers<[1], [0], [0], [1], [0, 0, 1, 1], [], []>} : vector<8x128xbf16>, vector<128x32xbf16>, vector<8x32xf32> -> vector<8x32xf32>
    %c0_64 = arith.constant 0 : index
    %c0_65 = arith.constant 0 : index
    %148 = vector.load %arg14[%c0_64, %c0_65] : memref<1x32xf32, #tpu.memory_space<vmem>>, vector<1x32xf32>
    %149 = vector.broadcast %148 : vector<1x32xf32> to vector<8x32xf32>
    %150 = arith.addf %147, %149 : vector<8x32xf32>
    %151 = arith.addf %63, %150 : vector<8x32xf32>
    %c0_66 = arith.constant 0 : index
    %c0_67 = arith.constant 0 : index
    %c0_68 = arith.constant 0 : index
    %152 = vector.load %arg15[%c0_66, %c0_67, %c0_68] : memref<1x8x32xf32, #tpu.memory_space<vmem>>, vector<1x8x32xf32>
    %153 = vector.shape_cast %152 : vector<1x8x32xf32> to vector<8x32xf32>
    %154 = vector.shape_cast %151 : vector<8x32xf32> to vector<1x8x32xf32>
    tpu.vector_store %arg15[%c0_66, %c0_67, %c0_68], %154 {strides = array<i32>} : memref<1x8x32xf32, #tpu.memory_space<vmem>>, vector<1x8x32xf32>,
    return
  }
  func.func @transform_0(%arg0: i32) -> (i32, i32, i32) {
    %c0_i32 = arith.constant 0 : i32
    %c0_i32_0 = arith.constant 0 : i32
    %c0_i32_1 = arith.constant 0 : i32
    return %arg0, %c0_i32, %c0_i32_0 : i32, i32, i32
  }
  func.func @transform_1(%arg0: i32) -> (i32, i32) {
    %c0_i32 = arith.constant 0 : i32
    %c0_i32_0 = arith.constant 0 : i32
    %c0_i32_1 = arith.constant 0 : i32
    return %c0_i32, %c0_i32_0 : i32, i32
  }
  func.func @transform_2(%arg0: i32) -> (i32, i32) {
    %c0_i32 = arith.constant 0 : i32
    %c0_i32_0 = arith.constant 0 : i32
    %c0_i32_1 = arith.constant 0 : i32
    return %c0_i32, %c0_i32_0 : i32, i32
  }
  func.func @transform_3(%arg0: i32) -> (i32, i32, i32) {
    %c0_i32 = arith.constant 0 : i32
    %c0_i32_0 = arith.constant 0 : i32
    %c0_i32_1 = arith.constant 0 : i32
    %c0_i32_2 = arith.constant 0 : i32
    return %c0_i32, %c0_i32_0, %c0_i32_1 : i32, i32, i32
  }
  func.func @transform_4(%arg0: i32) -> (i32, i32) {
    %c0_i32 = arith.constant 0 : i32
    %c0_i32_0 = arith.constant 0 : i32
    %c0_i32_1 = arith.constant 0 : i32
    return %c0_i32, %c0_i32_0 : i32, i32
  }
  func.func @transform_5(%arg0: i32) -> (i32, i32) {
    %c0_i32 = arith.constant 0 : i32
    %c0_i32_0 = arith.constant 0 : i32
    %c0_i32_1 = arith.constant 0 : i32
    return %c0_i32, %c0_i32_0 : i32, i32
  }
  func.func @transform_6(%arg0: i32) -> (i32, i32) {
    %c0_i32 = arith.constant 0 : i32
    %c0_i32_0 = arith.constant 0 : i32
    %c0_i32_1 = arith.constant 0 : i32
    return %c0_i32, %c0_i32_0 : i32, i32
  }
  func.func @transform_7(%arg0: i32) -> (i32, i32) {
    %c0_i32 = arith.constant 0 : i32
    %c0_i32_0 = arith.constant 0 : i32
    %c0_i32_1 = arith.constant 0 : i32
    return %c0_i32, %c0_i32_0 : i32, i32
  }
  func.func @transform_8(%arg0: i32) -> (i32, i32) {
    %c0_i32 = arith.constant 0 : i32
    %c0_i32_0 = arith.constant 0 : i32
    %c0_i32_1 = arith.constant 0 : i32
    return %c0_i32, %c0_i32_0 : i32, i32
  }
  func.func @transform_9(%arg0: i32) -> (i32, i32) {
    %c0_i32 = arith.constant 0 : i32
    %c0_i32_0 = arith.constant 0 : i32
    %c0_i32_1 = arith.constant 0 : i32
    return %c0_i32, %c0_i32_0 : i32, i32
  }
  func.func @transform_10(%arg0: i32) -> (i32, i32) {
    %c0_i32 = arith.constant 0 : i32
    %c0_i32_0 = arith.constant 0 : i32
    %c0_i32_1 = arith.constant 0 : i32
    return %c0_i32, %c0_i32_0 : i32, i32
  }
  func.func @transform_11(%arg0: i32) -> (i32, i32) {
    %c0_i32 = arith.constant 0 : i32
    %c0_i32_0 = arith.constant 0 : i32
    %c0_i32_1 = arith.constant 0 : i32
    return %c0_i32, %c0_i32_0 : i32, i32
  }
  func.func @transform_12(%arg0: i32) -> (i32, i32) {
    %c0_i32 = arith.constant 0 : i32
    %c0_i32_0 = arith.constant 0 : i32
    %c0_i32_1 = arith.constant 0 : i32
    return %c0_i32, %c0_i32_0 : i32, i32
  }
  func.func @transform_13(%arg0: i32) -> (i32, i32) {
    %c0_i32 = arith.constant 0 : i32
    %c0_i32_0 = arith.constant 0 : i32
    %c0_i32_1 = arith.constant 0 : i32
    return %c0_i32, %c0_i32_0 : i32, i32
  }
  func.func @transform_14(%arg0: i32) -> (i32, i32, i32) {
    %c0_i32 = arith.constant 0 : i32
    %c0_i32_0 = arith.constant 0 : i32
    %c0_i32_1 = arith.constant 0 : i32
    return %arg0, %c0_i32, %c0_i32_0 : i32, i32, i32
  }
}

</mosaic_0001>

<llo_original>
// kernel: tpu_custom_call.1
$region0: #{tpu_custom_call.1}
  #allocation0 [shape = 'u32[]', space=smem, size = 0x4, offset = 0x4, fixed_abs, tag = 'smem constant byte address 0x4 - core index']
  #allocation1 [shape = 'u32[144,128]{1,0:T(1,128)}', space=vmem, size = 0x12000, scoped, tag = 'internal scratch']
  %s0 = inlined_call_operand.vmem [shape: f32[2,8,32], index: 0, kind: input, shape index: {}]
  %s1 = inlined_call_operand.vmem [shape: f32[1,32], index: 1, kind: input, shape index: {}]
  %s2 = inlined_call_operand.vmem [shape: f32[1,32], index: 2, kind: input, shape index: {}]
  %s3 = inlined_call_operand.vmem [shape: bf16[4,32,8], index: 3, kind: input, shape index: {}]
  %s4 = inlined_call_operand.vmem [shape: bf16[32,32], index: 4, kind: input, shape index: {}]
  %s5 = inlined_call_operand.vmem [shape: bf16[32,32], index: 5, kind: input, shape index: {}]
  %s6 = inlined_call_operand.vmem [shape: bf16[32,32], index: 6, kind: input, shape index: {}]
  %s7 = inlined_call_operand.vmem [shape: f32[1,32], index: 7, kind: input, shape index: {}]
  %s8 = inlined_call_operand.vmem [shape: f32[1,32], index: 8, kind: input, shape index: {}]
  %s9 = inlined_call_operand.vmem [shape: f32[1,32], index: 9, kind: input, shape index: {}]
  %s10 = inlined_call_operand.vmem [shape: bf16[32,128], index: 10, kind: input, shape index: {}]
  %s11 = inlined_call_operand.vmem [shape: f32[1,128], index: 11, kind: input, shape index: {}]
  %s12 = inlined_call_operand.vmem [shape: bf16[128,32], index: 12, kind: input, shape index: {}]
  %s13 = inlined_call_operand.vmem [shape: f32[1,32], index: 13, kind: input, shape index: {}]
  %s14 = inlined_call_operand.hbm [shape: f32[2,8,32], index: 14, kind: output, shape index: {}]
  %s15 = sld [smem:[#allocation0]]
  $region89: #{tpu_custom_call.1} parent=0
    _
  %s17 = ssub.s32 1, %s15
  %s18 = scalar_select 0, %s17, %s15
  $region1: #{tpu_custom_call.1} parent=0
    #allocation2 [shape = 'u8[8192]{0}', space=vmem, size = 0x2000, scoped, tag = 'output window, operand 0']
    #allocation3 [shape = 's32[2]{0}', space=sflag, size = 0x8, scoped, tag = 'scoped memory for tpu_custom_call.1']
    %19 = vsyncpa [#allocation3], 0
    %s20 = scalar_lea.sflag [#allocation3], 1
    %21 = vsyncpa %s20, 0
    loop: start=0, step=1, limit=4
    $region2: #{tpu_custom_call.1} parent=1 // loop_pre_header
      _
    $region3: #{tpu_custom_call.1} parent=1 // loop_header
      %s23 = sphi 0, %s27
      %p24 = scmp.ge.s32.totalorder %s23, 4
      %s33 = sphi 0, %s35
      %s36 = sphi 0, %s33
      %s37 = sphi 0, %s36
      %s53 = sphi 0, %s37
      %s57 = sphi 0, %s57
      %s59 = sphi 0, %s57
      %s60 = sphi 0, %s59
      %s74 = sphi 0, %s60
      %s78 = sphi 0, %s78
      %s80 = sphi 0, %s78
      %s81 = sphi 0, %s80
      %s95 = sphi 0, %s81
      %s99 = sphi 0, %s99
      %s101 = sphi 0, %s99
      %s102 = sphi 0, %s101
      %s116 = sphi 0, %s102
      %s120 = sphi 0, %s120
      %s122 = sphi 0, %s120
      %s123 = sphi 0, %s122
      %s137 = sphi 0, %s123
      %s141 = sphi 0, %s141
      %s143 = sphi 0, %s141
      %s144 = sphi 0, %s143
      %s158 = sphi 0, %s144
      %s162 = sphi 0, %s162
      %s164 = sphi 0, %s162
      %s165 = sphi 0, %s164
      %s179 = sphi 0, %s165
      %s183 = sphi 0, %s183
      %s185 = sphi 0, %s183
      %s186 = sphi 0, %s185
      %s200 = sphi 0, %s186
      %s204 = sphi 0, %s204
      %s206 = sphi 0, %s204
      %s207 = sphi 0, %s206
      %s221 = sphi 0, %s207
      %s225 = sphi 0, %s225
      %s227 = sphi 0, %s225
      %s228 = sphi 0, %s227
      %s242 = sphi 0, %s228
      %s246 = sphi 0, %s246
      %s248 = sphi 0, %s246
      %s249 = sphi 0, %s248
      %s263 = sphi 0, %s249
      %s267 = sphi 0, %s267
      %s269 = sphi 0, %s267
      %s270 = sphi 0, %s269
      %s284 = sphi 0, %s270
      %s288 = sphi 0, %s288
      %s290 = sphi 0, %s288
      %s291 = sphi 0, %s290
      %s305 = sphi 0, %s291
      %s309 = sphi 0, %s309
      %s311 = sphi 0, %s309
      %s312 = sphi 0, %s311
      %s326 = sphi 0, %s312
      %s332 = sphi 0, %s334
      %s335 = sphi 0, %s332
      %s336 = sphi 0, %s335
      %s352 = sphi 0, %s336
    $region4: #{tpu_custom_call.1} parent=1 // loop_header_branch
      %26 = sbr.rel (%p24) target = $region8
    $region5: #{tpu_custom_call.1} parent=1 // loop_body
      %s28 = ssub.s32 %s23, 1
      %s29 = ssub.s32 %s23, 2
      %s30 = sadd.s32 %s23, 1
      %s31 = ssub.s32 %s23, %s30
      %p32 = scmp.eq.s32.totalorder %s31, 0
      %s34 = sadd.s32 %s33, 1
      %s35 = scalar_select %p32, %s33, %s34
      %p38 = pneg %p32
      %p39 = scmp.eq.s32.totalorder %s23, 1
      %p40 = por %p38, %p39
      %p41 = scmp.ne.s32.totalorder %s33, %s36
      %p42 = scmp.eq.s32.totalorder %s23, 0
      %p43 = por %p41, %p42
      %p44 = scmp.ne.s32.totalorder %s33, %s36
      %p45 = scmp.eq.s32.totalorder %s28, 1
      %p46 = por %p44, %p45
      %p47 = scmp.ne.s32.totalorder %s36, %s37
      %p48 = scmp.eq.s32.totalorder %s28, 0
      %p49 = por %p47, %p48
      %p50 = scmp.ne.s32.totalorder %s36, %s37
      %p51 = scmp.eq.s32.totalorder %s29, 1
      %p52 = por %p50, %p51
      %p54 = scmp.ne.s32.totalorder %s37, %s53
      %p55 = scmp.eq.s32.totalorder %s29, 0
      %p56 = por %p54, %p55
      %s58 = sadd.s32 %s57, 1
      %p61 = scmp.eq.s32.totalorder %s23, 1
      %p62 = scmp.ne.s32.totalorder %s57, %s59
      %p63 = scmp.eq.s32.totalorder %s23, 0
      %p64 = por %p62, %p63
      %p65 = scmp.ne.s32.totalorder %s57, %s59
      %p66 = scmp.eq.s32.totalorder %s28, 1
      %p67 = por %p65, %p66
      %p68 = scmp.ne.s32.totalorder %s59, %s60
      %p69 = scmp.eq.s32.totalorder %s28, 0
      %p70 = por %p68, %p69
      %p71 = scmp.ne.s32.totalorder %s59, %s60
      %p72 = scmp.eq.s32.totalorder %s29, 1
      %p73 = por %p71, %p72
      %p75 = scmp.ne.s32.totalorder %s60, %s74
      %p76 = scmp.eq.s32.totalorder %s29, 0
      %p77 = por %p75, %p76
      %s79 = sadd.s32 %s78, 1
      %p82 = scmp.eq.s32.totalorder %s23, 1
      %p83 = scmp.ne.s32.totalorder %s78, %s80
      %p84 = scmp.eq.s32.totalorder %s23, 0
      %p85 = por %p83, %p84
      %p86 = scmp.ne.s32.totalorder %s78, %s80
      %p87 = scmp.eq.s32.totalorder %s28, 1
      %p88 = por %p86, %p87
      %p89 = scmp.ne.s32.totalorder %s80, %s81
      %p90 = scmp.eq.s32.totalorder %s28, 0
      %p91 = por %p89, %p90
      %p92 = scmp.ne.s32.totalorder %s80, %s81
      %p93 = scmp.eq.s32.totalorder %s29, 1
      %p94 = por %p92, %p93
      %p96 = scmp.ne.s32.totalorder %s81, %s95
      %p97 = scmp.eq.s32.totalorder %s29, 0
      %p98 = por %p96, %p97
      %s100 = sadd.s32 %s99, 1
      %p103 = scmp.eq.s32.totalorder %s23, 1
      %p104 = scmp.ne.s32.totalorder %s99, %s101
      %p105 = scmp.eq.s32.totalorder %s23, 0
      %p106 = por %p104, %p105
      %p107 = scmp.ne.s32.totalorder %s99, %s101
      %p108 = scmp.eq.s32.totalorder %s28, 1
      %p109 = por %p107, %p108
      %p110 = scmp.ne.s32.totalorder %s101, %s102
      %p111 = scmp.eq.s32.totalorder %s28, 0
      %p112 = por %p110, %p111
      %p113 = scmp.ne.s32.totalorder %s101, %s102
      %p114 = scmp.eq.s32.totalorder %s29, 1
      %p115 = por %p113, %p114
      %p117 = scmp.ne.s32.totalorder %s102, %s116
      %p118 = scmp.eq.s32.totalorder %s29, 0
      %p119 = por %p117, %p118
      %s121 = sadd.s32 %s120, 1
      %p124 = scmp.eq.s32.totalorder %s23, 1
      %p125 = scmp.ne.s32.totalorder %s120, %s122
      %p126 = scmp.eq.s32.totalorder %s23, 0
      %p127 = por %p125, %p126
      %p128 = scmp.ne.s32.totalorder %s120, %s122
      %p129 = scmp.eq.s32.totalorder %s28, 1
      %p130 = por %p128, %p129
      %p131 = scmp.ne.s32.totalorder %s122, %s123
      %p132 = scmp.eq.s32.totalorder %s28, 0
      %p133 = por %p131, %p132
      %p134 = scmp.ne.s32.totalorder %s122, %s123
      %p135 = scmp.eq.s32.totalorder %s29, 1
      %p136 = por %p134, %p135
      %p138 = scmp.ne.s32.totalorder %s123, %s137
      %p139 = scmp.eq.s32.totalorder %s29, 0
      %p140 = por %p138, %p139
      %s142 = sadd.s32 %s141, 1
      %p145 = scmp.eq.s32.totalorder %s23, 1
      %p146 = scmp.ne.s32.totalorder %s141, %s143
      %p147 = scmp.eq.s32.totalorder %s23, 0
      %p148 = por %p146, %p147
      %p149 = scmp.ne.s32.totalorder %s141, %s143
      %p150 = scmp.eq.s32.totalorder %s28, 1
      %p151 = por %p149, %p150
      %p152 = scmp.ne.s32.totalorder %s143, %s144
      %p153 = scmp.eq.s32.totalorder %s28, 0
      %p154 = por %p152, %p153
      %p155 = scmp.ne.s32.totalorder %s143, %s144
      %p156 = scmp.eq.s32.totalorder %s29, 1
      %p157 = por %p155, %p156
      %p159 = scmp.ne.s32.totalorder %s144, %s158
      %p160 = scmp.eq.s32.totalorder %s29, 0
      %p161 = por %p159, %p160
      %s163 = sadd.s32 %s162, 1
      %p166 = scmp.eq.s32.totalorder %s23, 1
      %p167 = scmp.ne.s32.totalorder %s162, %s164
      %p168 = scmp.eq.s32.totalorder %s23, 0
      %p169 = por %p167, %p168
      %p170 = scmp.ne.s32.totalorder %s162, %s164
      %p171 = scmp.eq.s32.totalorder %s28, 1
      %p172 = por %p170, %p171
      %p173 = scmp.ne.s32.totalorder %s164, %s165
      %p174 = scmp.eq.s32.totalorder %s28, 0
      %p175 = por %p173, %p174
      %p176 = scmp.ne.s32.totalorder %s164, %s165
      %p177 = scmp.eq.s32.totalorder %s29, 1
      %p178 = por %p176, %p177
      %p180 = scmp.ne.s32.totalorder %s165, %s179
      %p181 = scmp.eq.s32.totalorder %s29, 0
      %p182 = por %p180, %p181
      %s184 = sadd.s32 %s183, 1
      %p187 = scmp.eq.s32.totalorder %s23, 1
      %p188 = scmp.ne.s32.totalorder %s183, %s185
      %p189 = scmp.eq.s32.totalorder %s23, 0
      %p190 = por %p188, %p189
      %p191 = scmp.ne.s32.totalorder %s183, %s185
      %p192 = scmp.eq.s32.totalorder %s28, 1
      %p193 = por %p191, %p192
      %p194 = scmp.ne.s32.totalorder %s185, %s186
      %p195 = scmp.eq.s32.totalorder %s28, 0
      %p196 = por %p194, %p195
      %p197 = scmp.ne.s32.totalorder %s185, %s186
      %p198 = scmp.eq.s32.totalorder %s29, 1
      %p199 = por %p197, %p198
      %p201 = scmp.ne.s32.totalorder %s186, %s200
      %p202 = scmp.eq.s32.totalorder %s29, 0
      %p203 = por %p201, %p202
      %s205 = sadd.s32 %s204, 1
      %p208 = scmp.eq.s32.totalorder %s23, 1
      %p209 = scmp.ne.s32.totalorder %s204, %s206
      %p210 = scmp.eq.s32.totalorder %s23, 0
      %p211 = por %p209, %p210
      %p212 = scmp.ne.s32.totalorder %s204, %s206
      %p213 = scmp.eq.s32.totalorder %s28, 1
      %p214 = por %p212, %p213
      %p215 = scmp.ne.s32.totalorder %s206, %s207
      %p216 = scmp.eq.s32.totalorder %s28, 0
      %p217 = por %p215, %p216
      %p218 = scmp.ne.s32.totalorder %s206, %s207
      %p219 = scmp.eq.s32.totalorder %s29, 1
      %p220 = por %p218, %p219
      %p222 = scmp.ne.s32.totalorder %s207, %s221
      %p223 = scmp.eq.s32.totalorder %s29, 0
      %p224 = por %p222, %p223
      %s226 = sadd.s32 %s225, 1
      %p229 = scmp.eq.s32.totalorder %s23, 1
      %p230 = scmp.ne.s32.totalorder %s225, %s227
      %p231 = scmp.eq.s32.totalorder %s23, 0
      %p232 = por %p230, %p231
      %p233 = scmp.ne.s32.totalorder %s225, %s227
      %p234 = scmp.eq.s32.totalorder %s28, 1
      %p235 = por %p233, %p234
      %p236 = scmp.ne.s32.totalorder %s227, %s228
      %p237 = scmp.eq.s32.totalorder %s28, 0
      %p238 = por %p236, %p237
      %p239 = scmp.ne.s32.totalorder %s227, %s228
      %p240 = scmp.eq.s32.totalorder %s29, 1
      %p241 = por %p239, %p240
      %p243 = scmp.ne.s32.totalorder %s228, %s242
      %p244 = scmp.eq.s32.totalorder %s29, 0
      %p245 = por %p243, %p244
      %s247 = sadd.s32 %s246, 1
      %p250 = scmp.eq.s32.totalorder %s23, 1
      %p251 = scmp.ne.s32.totalorder %s246, %s248
      %p252 = scmp.eq.s32.totalorder %s23, 0
      %p253 = por %p251, %p252
      %p254 = scmp.ne.s32.totalorder %s246, %s248
      %p255 = scmp.eq.s32.totalorder %s28, 1
      %p256 = por %p254, %p255
      %p257 = scmp.ne.s32.totalorder %s248, %s249
      %p258 = scmp.eq.s32.totalorder %s28, 0
      %p259 = por %p257, %p258
      %p260 = scmp.ne.s32.totalorder %s248, %s249
      %p261 = scmp.eq.s32.totalorder %s29, 1
      %p262 = por %p260, %p261
      %p264 = scmp.ne.s32.totalorder %s249, %s263
      %p265 = scmp.eq.s32.totalorder %s29, 0
      %p266 = por %p264, %p265
      %s268 = sadd.s32 %s267, 1
      %p271 = scmp.eq.s32.totalorder %s23, 1
      %p272 = scmp.ne.s32.totalorder %s267, %s269
      %p273 = scmp.eq.s32.totalorder %s23, 0
      %p274 = por %p272, %p273
      %p275 = scmp.ne.s32.totalorder %s267, %s269
      %p276 = scmp.eq.s32.totalorder %s28, 1
      %p277 = por %p275, %p276
      %p278 = scmp.ne.s32.totalorder %s269, %s270
      %p279 = scmp.eq.s32.totalorder %s28, 0
      %p280 = por %p278, %p279
      %p281 = scmp.ne.s32.totalorder %s269, %s270
      %p282 = scmp.eq.s32.totalorder %s29, 1
      %p283 = por %p281, %p282
      %p285 = scmp.ne.s32.totalorder %s270, %s284
      %p286 = scmp.eq.s32.totalorder %s29, 0
      %p287 = por %p285, %p286
      %s289 = sadd.s32 %s288, 1
      %p292 = scmp.eq.s32.totalorder %s23, 1
      %p293 = scmp.ne.s32.totalorder %s288, %s290
      %p294 = scmp.eq.s32.totalorder %s23, 0
      %p295 = por %p293, %p294
      %p296 = scmp.ne.s32.totalorder %s288, %s290
      %p297 = scmp.eq.s32.totalorder %s28, 1
      %p298 = por %p296, %p297
      %p299 = scmp.ne.s32.totalorder %s290, %s291
      %p300 = scmp.eq.s32.totalorder %s28, 0
      %p301 = por %p299, %p300
      %p302 = scmp.ne.s32.totalorder %s290, %s291
      %p303 = scmp.eq.s32.totalorder %s29, 1
      %p304 = por %p302, %p303
      %p306 = scmp.ne.s32.totalorder %s291, %s305
      %p307 = scmp.eq.s32.totalorder %s29, 0
      %p308 = por %p306, %p307
      %s310 = sadd.s32 %s309, 1
      %p313 = scmp.eq.s32.totalorder %s23, 1
      %p314 = scmp.ne.s32.totalorder %s309, %s311
      %p315 = scmp.eq.s32.totalorder %s23, 0
      %p316 = por %p314, %p315
      %p317 = scmp.ne.s32.totalorder %s309, %s311
      %p318 = scmp.eq.s32.totalorder %s28, 1
      %p319 = por %p317, %p318
      %p320 = scmp.ne.s32.totalorder %s311, %s312
      %p321 = scmp.eq.s32.totalorder %s28, 0
      %p322 = por %p320, %p321
      %p323 = scmp.ne.s32.totalorder %s311, %s312
      %p324 = scmp.eq.s32.totalorder %s29, 1
      %p325 = por %p323, %p324
      %p327 = scmp.ne.s32.totalorder %s312, %s326
      %p328 = scmp.eq.s32.totalorder %s29, 0
      %p329 = por %p327, %p328
      %s330 = ssub.s32 %s23, %s30
      %p331 = scmp.eq.s32.totalorder %s330, 0
      %s333 = sadd.s32 %s332, 1
      %s334 = scalar_select %p331, %s332, %s333
      %p337 = pneg %p331
      %p338 = scmp.eq.s32.totalorder %s23, 1
      %p339 = por %p337, %p338
      %p340 = scmp.ne.s32.totalorder %s332, %s335
      %p341 = scmp.eq.s32.totalorder %s23, 0
      %p342 = por %p340, %p341
      %p343 = scmp.ne.s32.totalorder %s332, %s335
      %p344 = scmp.eq.s32.totalorder %s28, 1
      %p345 = por %p343, %p344
      %p346 = scmp.ne.s32.totalorder %s335, %s336
      %p347 = scmp.eq.s32.totalorder %s28, 0
      %p348 = por %p346, %p347
      %p349 = scmp.ne.s32.totalorder %s335, %s336
      %p350 = scmp.eq.s32.totalorder %s29, 1
      %p351 = por %p349, %p350
      %p353 = scmp.ne.s32.totalorder %s336, %s352
      %p354 = scmp.eq.s32.totalorder %s29, 0
      %p355 = por %p353, %p354
      %p356 = scmp.le.s32.totalorder 1, %s23
      %p357 = scmp.lt.s32.totalorder %s23, 3
      %p358 = pnand %p356, %p357
      %p359 = pneg %p358
      // Predicated region
      $region9: #{tpu_custom_call.1} parent=5 // pred_check
        _
      $region10: #{tpu_custom_call.1} parent=5 // pred_check_branch
        %361 = sbr.rel (%p358) target = $region12
      $region11: #{tpu_custom_call.1} parent=5 // pred_region
        %s362 = ssub.s32 %s23, 1
        // Predicated region
        $region13: #{tpu_custom_call.1} parent=11 // pred_check
          %p363 = pneg %p70
        $region14: #{tpu_custom_call.1} parent=11 // pred_check_branch
          %365 = sbr.rel (%p363) target = $region16
        $region15: #{tpu_custom_call.1} parent=11 // pred_region
          _
        $region16: #{tpu_custom_call.1} parent=11 // pred_fallthru
          _
        // Predicated region
        $region17: #{tpu_custom_call.1} parent=11 // pred_check
          %p366 = pneg %p91
        $region18: #{tpu_custom_call.1} parent=11 // pred_check_branch
          %368 = sbr.rel (%p366) target = $region20
        $region19: #{tpu_custom_call.1} parent=11 // pred_region
          _
        $region20: #{tpu_custom_call.1} parent=11 // pred_fallthru
          _
        // Predicated region
        $region21: #{tpu_custom_call.1} parent=11 // pred_check
          %p369 = pneg %p112
        $region22: #{tpu_custom_call.1} parent=11 // pred_check_branch
          %371 = sbr.rel (%p369) target = $region24
        $region23: #{tpu_custom_call.1} parent=11 // pred_region
          _
        $region24: #{tpu_custom_call.1} parent=11 // pred_fallthru
          _
        // Predicated region
        $region25: #{tpu_custom_call.1} parent=11 // pred_check
          %p372 = pneg %p133
        $region26: #{tpu_custom_call.1} parent=11 // pred_check_branch
          %374 = sbr.rel (%p372) target = $region28
        $region27: #{tpu_custom_call.1} parent=11 // pred_region
          _
        $region28: #{tpu_custom_call.1} parent=11 // pred_fallthru
          _
        // Predicated region
        $region29: #{tpu_custom_call.1} parent=11 // pred_check
          %p375 = pneg %p154
        $region30: #{tpu_custom_call.1} parent=11 // pred_check_branch
          %377 = sbr.rel (%p375) target = $region32
        $region31: #{tpu_custom_call.1} parent=11 // pred_region
          _
        $region32: #{tpu_custom_call.1} parent=11 // pred_fallthru
          _
        // Predicated region
        $region33: #{tpu_custom_call.1} parent=11 // pred_check
          %p378 = pneg %p175
        $region34: #{tpu_custom_call.1} parent=11 // pred_check_branch
          %380 = sbr.rel (%p378) target = $region36
        $region35: #{tpu_custom_call.1} parent=11 // pred_region
          _
        $region36: #{tpu_custom_call.1} parent=11 // pred_fallthru
          _
        // Predicated region
        $region37: #{tpu_custom_call.1} parent=11 // pred_check
          %p381 = pneg %p196
        $region38: #{tpu_custom_call.1} parent=11 // pred_check_branch
          %383 = sbr.rel (%p381) target = $region40
        $region39: #{tpu_custom_call.1} parent=11 // pred_region
          _
        $region40: #{tpu_custom_call.1} parent=11 // pred_fallthru
          _
        // Predicated region
        $region41: #{tpu_custom_call.1} parent=11 // pred_check
          %p384 = pneg %p217
        $region42: #{tpu_custom_call.1} parent=11 // pred_check_branch
          %386 = sbr.rel (%p384) target = $region44
        $region43: #{tpu_custom_call.1} parent=11 // pred_region
          _
        $region44: #{tpu_custom_call.1} parent=11 // pred_fallthru
          _
        // Predicated region
        $region45: #{tpu_custom_call.1} parent=11 // pred_check
          %p387 = pneg %p238
        $region46: #{tpu_custom_call.1} parent=11 // pred_check_branch
          %389 = sbr.rel (%p387) target = $region48
        $region47: #{tpu_custom_call.1} parent=11 // pred_region
          _
        $region48: #{tpu_custom_call.1} parent=11 // pred_fallthru
          _
        // Predicated region
        $region49: #{tpu_custom_call.1} parent=11 // pred_check
          %p390 = pneg %p259
        $region50: #{tpu_custom_call.1} parent=11 // pred_check_branch
          %392 = sbr.rel (%p390) target = $region52
        $region51: #{tpu_custom_call.1} parent=11 // pred_region
          _
        $region52: #{tpu_custom_call.1} parent=11 // pred_fallthru
          _
        // Predicated region
        $region53: #{tpu_custom_call.1} parent=11 // pred_check
          %p393 = pneg %p280
        $region54: #{tpu_custom_call.1} parent=11 // pred_check_branch
          %395 = sbr.rel (%p393) target = $region56
        $region55: #{tpu_custom_call.1} parent=11 // pred_region
          _
        $region56: #{tpu_custom_call.1} parent=11 // pred_fallthru
          _
        // Predicated region
        $region57: #{tpu_custom_call.1} parent=11 // pred_check
          %p396 = pneg %p301
        $region58: #{tpu_custom_call.1} parent=11 // pred_check_branch
          %398 = sbr.rel (%p396) target = $region60
        $region59: #{tpu_custom_call.1} parent=11 // pred_region
          _
        $region60: #{tpu_custom_call.1} parent=11 // pred_fallthru
          _
        // Predicated region
        $region61: #{tpu_custom_call.1} parent=11 // pred_check
          %p399 = pneg %p322
        $region62: #{tpu_custom_call.1} parent=11 // pred_check_branch
          %401 = sbr.rel (%p399) target = $region64
        $region63: #{tpu_custom_call.1} parent=11 // pred_region
          _
        $region64: #{tpu_custom_call.1} parent=11 // pred_fallthru
          _
      $region12: #{tpu_custom_call.1} parent=5 // pred_fallthru
        _
      %p402 = scmp.lt.s32.totalorder %s23, 2
      // Predicated region
      $region65: #{tpu_custom_call.1} parent=5 // pred_check
        %p403 = pneg %p402
      $region66: #{tpu_custom_call.1} parent=5 // pred_check_branch
        %405 = sbr.rel (%p403) target = $region68
      $region67: #{tpu_custom_call.1} parent=5 // pred_region
        // Predicated region
        $region69: #{tpu_custom_call.1} parent=67 // pred_check
          %p406 = pneg %p43
        $region70: #{tpu_custom_call.1} parent=67 // pred_check_branch
          %408 = sbr.rel (%p406) target = $region72
        $region71: #{tpu_custom_call.1} parent=67 // pred_region
          %p409 = scmp.lt.s32.totalorder %s23, 1
          %s410 = scalar_select %p409, %s23, 1
          %s411 = smul.addr %s410, 8
          %s412 = scalar_lea.vmem %s0, %s411
        $region72: #{tpu_custom_call.1} parent=67 // pred_fallthru
          _
      $region68: #{tpu_custom_call.1} parent=5 // pred_fallthru
        _
      %p413 = scmp.le.s32.totalorder 1, %s23
      %p414 = scmp.lt.s32.totalorder %s23, 3
      %p415 = pnand %p413, %p414
      %p416 = pneg %p415
      // Predicated region
      $region73: #{tpu_custom_call.1} parent=5 // pred_check
        _
      $region74: #{tpu_custom_call.1} parent=5 // pred_check_branch
        %418 = sbr.rel (%p415) target = $region76
      $region75: #{tpu_custom_call.1} parent=5 // pred_region
        %s419 = ssub.s32 %s23, 1
        %p420 = scmp.lt.s32.totalorder %s28, 1
        %s421 = scalar_select %p420, %s28, 1
        %s422 = smul.addr %s421, 8
        %s423 = scalar_lea.vmem %s0, %s422
        %p424 = pneg %p49
        %p425 = pneg %p46
        %p426 = pneg %p70
        %p427 = pneg %p67
        %p428 = pneg %p91
        %p429 = pneg %p88
        %p430 = pneg %p112
        %p431 = pneg %p109
        %p432 = pneg %p133
        %p433 = pneg %p130
        %p434 = pneg %p154
        %p435 = pneg %p151
        %p436 = pneg %p175
        %p437 = pneg %p172
        %p438 = pneg %p196
        %p439 = pneg %p193
        %p440 = pneg %p217
        %p441 = pneg %p214
        %p442 = pneg %p238
        %p443 = pneg %p235
        %p444 = pneg %p259
        %p445 = pneg %p256
        %p446 = pneg %p280
        %p447 = pneg %p277
        %p448 = pneg %p301
        %p449 = pneg %p298
        %p450 = pneg %p322
        %p451 = pneg %p319
        %p452 = pneg %p348
        %p453 = pneg %p345
        %s454 = sand.u32 %s335, 1
        %s455 = scalar_lea.sflag [#allocation3], %s454
        %s456 = sand.u32 %s335, 1
        %s457 = smul.addr %s456, 8
        %s458 = scalar_lea.vmem [#allocation2], %s457
        %p459 = scmp.lt.s32.totalorder %s28, 1
        %s460 = scalar_select %p459, %s28, 1
        %s461 = smul.addr %s460, 8
        %s462 = scalar_lea.vmem %s0, %s461
        %v464 = vld [vmem:[%s462] sm:$0xff]
        %v465 = vld [vmem:[%s1] sm:$0x1]
        %v466 = vld [vmem:[%s2] sm:$0x1]
        %vm467 = vcmask 261120
        %v468 = vsel %vm467, %v464, 0.0
        %469 = vadd.xlane.f32.xlu0 %v468
        %v470 = vpop.xlane.xlu0 %469
        %v471 = vrcp.pop 32.0
        %v472 = vmul.f32 %v470, %v471
        %v473 = vsub.f32 %v464, %v472
        %v474 = vmul.f32 %v473, %v473
        %v475 = vsel %vm467, %v474, 0.0
        %476 = vadd.xlane.f32.xlu0 %v475
        %v477 = vpop.xlane.xlu0 %476
        %v478 = vmul.f32 %v477, %v471
        %v479 = vadd.f32 %v478, 1e-05
        %v480 = vrsqrt.pop %v479
        %v481 = vmul.f32 %v473, %v480
        %v483 = vlaneseq
        %v484 = vshrl.u32 %v483, 7
        %v485 = vsub.s32 0, %v484
        %v486 = vrot.slane %v465, %v485
        %v488 = vmul.f32 %v481, %v486
        %v490 = vlaneseq
        %v491 = vshrl.u32 %v490, 7
        %v492 = vsub.s32 0, %v491
        %v493 = vrot.slane %v466, %v492
        %v495 = vadd.f32 %v488, %v493
        %v496 = vpack.c.bf16 %v495, %v495
        %497 = vxpose.xlu0.b32.start [1/16] %v495, 128
        %498 = vxpose.xlu0.b32.cont [2/16] 0.0, 128
        %499 = vxpose.xlu0.b32.cont [3/16] 0.0, 128
        %500 = vxpose.xlu0.b32.cont [4/16] 0.0, 128
        %501 = vxpose.xlu0.b32.cont [5/16] 0.0, 128
        %502 = vxpose.xlu0.b32.cont [6/16] 0.0, 128
        %503 = vxpose.xlu0.b32.cont [7/16] 0.0, 128
        %504 = vxpose.xlu0.b32.cont [8/16] 0.0, 128
        %505 = vxpose.xlu0.b32.cont [9/16] 0.0, 128
        %506 = vxpose.xlu0.b32.cont [10/16] 0.0, 128
        %507 = vxpose.xlu0.b32.cont [11/16] 0.0, 128
        %508 = vxpose.xlu0.b32.cont [12/16] 0.0, 128
        %509 = vxpose.xlu0.b32.cont [13/16] 0.0, 128
        %510 = vxpose.xlu0.b32.cont [14/16] 0.0, 128
        %511 = vxpose.xlu0.b32.cont [15/16] 0.0, 128
        %512 = vxpose.xlu0.b32.end [16/16] 0.0, 128
        %v513 = vpop.trf.xlu0
        %v514 = vpop.trf.xlu0
        %v515 = vpop.trf.xlu0
        %v516 = vpop.trf.xlu0
        %v517 = vpop.trf.xlu0
        %v518 = vpop.trf.xlu0
        %v519 = vpop.trf.xlu0
        %v520 = vpop.trf.xlu0
        %v521 = vpop.trf.xlu0
        %v522 = vpop.trf.xlu0
        %v523 = vpop.trf.xlu0
        %v524 = vpop.trf.xlu0
        %v525 = vpop.trf.xlu0
        %v526 = vpop.trf.xlu0
        %v527 = vpop.trf.xlu0
        %v528 = vpop.trf.xlu0
        %v529 = vpack.c.bf16 %v514, %v513
        %v530 = vpack.c.bf16 %v516, %v515
        %v531 = vld [vmem:[%s3] sm:$0xf]
        %v532 = vld [vmem:[%s3 + $0x4] sm:$0xf]
        %v533 = vld [vmem:[%s3 + $0x8] sm:$0xf]
        %v534 = vld [vmem:[%s3 + $0xc] sm:$0xf]
        %v535 = vld [vmem:[%s3 + $0x10] sm:$0xf]
        %v536 = vld [vmem:[%s3 + $0x14] sm:$0xf]
        %v537 = vld [vmem:[%s3 + $0x18] sm:$0xf]
        %v538 = vld [vmem:[%s3 + $0x1c] sm:$0xf]
        %v539 = vld [vmem:[%s3 + $0x20] sm:$0xf]
        %v540 = vld [vmem:[%s3 + $0x24] sm:$0xf]
        %v541 = vld [vmem:[%s3 + $0x28] sm:$0xf]
        %v542 = vld [vmem:[%s3 + $0x2c] sm:$0xf]
        %v543 = vld [vmem:[%s3 + $0x30] sm:$0xf]
        %v544 = vld [vmem:[%s3 + $0x34] sm:$0xf]
        %v545 = vld [vmem:[%s3 + $0x38] sm:$0xf]
        %v546 = vld [vmem:[%s3 + $0x3c] sm:$0xf]
        %v551 = vunpack.c.l.b16 %v531
        %v552 = vunpack.c.l.b16 %v532
        %v553 = vunpack.c.l.b16 %v533
        %v554 = vunpack.c.l.b16 %v534
        %v555 = vpack.c.b16 %v552, %v551
        %v556 = vpack.c.b16 %v554, %v553
        %v560 = vsel %vm467, %v496, 0
        %562 = vmatprep.subr.bf16.mxu0 0
        %563 = vmatpush1.bf16.msra.mxu0 0
        %564 = vmatprep.subr.bf16.mxu0 0
        %565 = vmatpush1.bf16.msra.mxu0 0
        %566 = vmatprep.subr.bf16.mxu0 0
        %567 = vmatpush1.bf16.msra.mxu0 0
        %568 = vmatprep.subr.bf16.mxu0 0
        %569 = vmatpush1.bf16.msra.mxu0 0
        %570 = vmatprep.subr.bf16.mxu0 0
        %571 = vmatpush1.bf16.msra.mxu0 0
        %572 = vmatprep.subr.bf16.mxu0 0
        %573 = vmatpush1.bf16.msra.mxu0 0
        %574 = vmatprep.subr.bf16.mxu0 0
        %575 = vmatpush1.bf16.msra.mxu0 %v556
        %576 = vmatprep.subr.bf16.mxu0 0
        %577 = vmatpush1.bf16.msra.mxu0 %v555
        %578 = vmatprep.subr.bf16.mxu0 0
        %579 = vmatpush2.bf16.msra.mxu0 0
        %580 = vmatprep.subr.bf16.mxu0 0
        %581 = vmatpush2.bf16.msra.mxu0 0
        %582 = vmatprep.subr.bf16.mxu0 0
        %583 = vmatpush2.bf16.msra.mxu0 0
        %584 = vmatprep.subr.bf16.mxu0 0
        %585 = vmatpush2.bf16.msra.mxu0 0
        %586 = vmatprep.subr.bf16.mxu0 0
        %587 = vmatpush2.bf16.msra.mxu0 0
        %588 = vmatprep.subr.bf16.mxu0 0
        %589 = vmatpush2.bf16.msra.mxu0 0
        %590 = vmatprep.subr.bf16.mxu0 0
        %591 = vmatpush2.bf16.msra.mxu0 0
        %592 = vmatprep.subr.bf16.mxu0 0
        %593 = vmatpush2.bf16.msra.mxu0 0
        %594 = vmatprep.mubr.bf16.mxu0 0
        %595 = vmatmul.mubr.bf16.gmra.mxu0 %v560
        %v596 = vpop.f32.mrf.mxu0
        %v597 = vadd.f32 0.0, %v596
        %v598 = vpop.f32.mrf.mxu0
        %v599 = vpop.f32.mrf.mxu0
        %v600 = vpop.f32.mrf.mxu0
        %601 = vdwg.mxu0
        %v606 = vunpack.c.l.b16 %v535
        %v607 = vunpack.c.l.b16 %v536
        %v608 = vunpack.c.l.b16 %v537
        %v609 = vunpack.c.l.b16 %v538
        %v610 = vpack.c.b16 %v607, %v606
        %v611 = vpack.c.b16 %v609, %v608
        %614 = vmatprep.subr.bf16.mxu0 0
        %615 = vmatpush1.bf16.msra.mxu0 0
        %616 = vmatprep.subr.bf16.mxu0 0
        %617 = vmatpush1.bf16.msra.mxu0 0
        %618 = vmatprep.subr.bf16.mxu0 0
        %619 = vmatpush1.bf16.msra.mxu0 0
        %620 = vmatprep.subr.bf16.mxu0 0
        %621 = vmatpush1.bf16.msra.mxu0 0
        %622 = vmatprep.subr.bf16.mxu0 0
        %623 = vmatpush1.bf16.msra.mxu0 0
        %624 = vmatprep.subr.bf16.mxu0 0
        %625 = vmatpush1.bf16.msra.mxu0 0
        %626 = vmatprep.subr.bf16.mxu0 0
        %627 = vmatpush1.bf16.msra.mxu0 %v611
        %628 = vmatprep.subr.bf16.mxu0 0
        %629 = vmatpush1.bf16.msra.mxu0 %v610
        %630 = vmatprep.subr.bf16.mxu0 0
        %631 = vmatpush2.bf16.msra.mxu0 0
        %632 = vmatprep.subr.bf16.mxu0 0
        %633 = vmatpush2.bf16.msra.mxu0 0
        %634 = vmatprep.subr.bf16.mxu0 0
        %635 = vmatpush2.bf16.msra.mxu0 0
        %636 = vmatprep.subr.bf16.mxu0 0
        %637 = vmatpush2.bf16.msra.mxu0 0
        %638 = vmatprep.subr.bf16.mxu0 0
        %639 = vmatpush2.bf16.msra.mxu0 0
        %640 = vmatprep.subr.bf16.mxu0 0
        %641 = vmatpush2.bf16.msra.mxu0 0
        %642 = vmatprep.subr.bf16.mxu0 0
        %643 = vmatpush2.bf16.msra.mxu0 0
        %644 = vmatprep.subr.bf16.mxu0 0
        %645 = vmatpush2.bf16.msra.mxu0 0
        %646 = vmatprep.mubr.bf16.mxu0 0
        %647 = vmatmul.mubr.bf16.gmra.mxu0 %v560
        %v648 = vpop.f32.mrf.mxu0
        %v649 = vadd.f32 0.0, %v648
        %v650 = vpop.f32.mrf.mxu0
        %v651 = vpop.f32.mrf.mxu0
        %v652 = vpop.f32.mrf.mxu0
        %653 = vdwg.mxu0
        %v658 = vunpack.c.l.b16 %v539
        %v659 = vunpack.c.l.b16 %v540
        %v660 = vunpack.c.l.b16 %v541
        %v661 = vunpack.c.l.b16 %v542
        %v662 = vpack.c.b16 %v659, %v658
        %v663 = vpack.c.b16 %v661, %v660
        %666 = vmatprep.subr.bf16.mxu0 0
        %667 = vmatpush1.bf16.msra.mxu0 0
        %668 = vmatprep.subr.bf16.mxu0 0
        %669 = vmatpush1.bf16.msra.mxu0 0
        %670 = vmatprep.subr.bf16.mxu0 0
        %671 = vmatpush1.bf16.msra.mxu0 0
        %672 = vmatprep.subr.bf16.mxu0 0
        %673 = vmatpush1.bf16.msra.mxu0 0
        %674 = vmatprep.subr.bf16.mxu0 0
        %675 = vmatpush1.bf16.msra.mxu0 0
        %676 = vmatprep.subr.bf16.mxu0 0
        %677 = vmatpush1.bf16.msra.mxu0 0
        %678 = vmatprep.subr.bf16.mxu0 0
        %679 = vmatpush1.bf16.msra.mxu0 %v663
        %680 = vmatprep.subr.bf16.mxu0 0
        %681 = vmatpush1.bf16.msra.mxu0 %v662
        %682 = vmatprep.subr.bf16.mxu0 0
        %683 = vmatpush2.bf16.msra.mxu0 0
        %684 = vmatprep.subr.bf16.mxu0 0
        %685 = vmatpush2.bf16.msra.mxu0 0
        %686 = vmatprep.subr.bf16.mxu0 0
        %687 = vmatpush2.bf16.msra.mxu0 0
        %688 = vmatprep.subr.bf16.mxu0 0
        %689 = vmatpush2.bf16.msra.mxu0 0
        %690 = vmatprep.subr.bf16.mxu0 0
        %691 = vmatpush2.bf16.msra.mxu0 0
        %692 = vmatprep.subr.bf16.mxu0 0
        %693 = vmatpush2.bf16.msra.mxu0 0
        %694 = vmatprep.subr.bf16.mxu0 0
        %695 = vmatpush2.bf16.msra.mxu0 0
        %696 = vmatprep.subr.bf16.mxu0 0
        %697 = vmatpush2.bf16.msra.mxu0 0
        %698 = vmatprep.mubr.bf16.mxu0 0
        %699 = vmatmul.mubr.bf16.gmra.mxu0 %v560
        %v700 = vpop.f32.mrf.mxu0
        %v701 = vadd.f32 0.0, %v700
        %v702 = vpop.f32.mrf.mxu0
        %v703 = vpop.f32.mrf.mxu0
        %v704 = vpop.f32.mrf.mxu0
        %705 = vdwg.mxu0
        %v710 = vunpack.c.l.b16 %v543
        %v711 = vunpack.c.l.b16 %v544
        %v712 = vunpack.c.l.b16 %v545
        %v713 = vunpack.c.l.b16 %v546
        %v714 = vpack.c.b16 %v711, %v710
        %v715 = vpack.c.b16 %v713, %v712
        %718 = vmatprep.subr.bf16.mxu0 0
        %719 = vmatpush1.bf16.msra.mxu0 0
        %720 = vmatprep.subr.bf16.mxu0 0
        %721 = vmatpush1.bf16.msra.mxu0 0
        %722 = vmatprep.subr.bf16.mxu0 0
        %723 = vmatpush1.bf16.msra.mxu0 0
        %724 = vmatprep.subr.bf16.mxu0 0
        %725 = vmatpush1.bf16.msra.mxu0 0
        %726 = vmatprep.subr.bf16.mxu0 0
        %727 = vmatpush1.bf16.msra.mxu0 0
        %728 = vmatprep.subr.bf16.mxu0 0
        %729 = vmatpush1.bf16.msra.mxu0 0
        %730 = vmatprep.subr.bf16.mxu0 0
        %731 = vmatpush1.bf16.msra.mxu0 %v715
        %732 = vmatprep.subr.bf16.mxu0 0
        %733 = vmatpush1.bf16.msra.mxu0 %v714
        %734 = vmatprep.subr.bf16.mxu0 0
        %735 = vmatpush2.bf16.msra.mxu0 0
        %736 = vmatprep.subr.bf16.mxu0 0
        %737 = vmatpush2.bf16.msra.mxu0 0
        %738 = vmatprep.subr.bf16.mxu0 0
        %739 = vmatpush2.bf16.msra.mxu0 0
        %740 = vmatprep.subr.bf16.mxu0 0
        %741 = vmatpush2.bf16.msra.mxu0 0
        %742 = vmatprep.subr.bf16.mxu0 0
        %743 = vmatpush2.bf16.msra.mxu0 0
        %744 = vmatprep.subr.bf16.mxu0 0
        %745 = vmatpush2.bf16.msra.mxu0 0
        %746 = vmatprep.subr.bf16.mxu0 0
        %747 = vmatpush2.bf16.msra.mxu0 0
        %748 = vmatprep.subr.bf16.mxu0 0
        %749 = vmatpush2.bf16.msra.mxu0 0
        %750 = vmatprep.mubr.bf16.mxu0 0
        %751 = vmatmul.mubr.bf16.gmra.mxu0 %v560
        %v752 = vpop.f32.mrf.mxu0
        %v753 = vadd.f32 0.0, %v752
        %v754 = vpop.f32.mrf.mxu0
        %v755 = vpop.f32.mrf.mxu0
        %v756 = vpop.f32.mrf.mxu0
        %757 = vdwg.mxu0
        %v758 = vpack.c.bf16 %v597, %v597
        %v759 = vpack.c.bf16 %v649, %v649
        %v760 = vpack.c.bf16 %v701, %v701
        %v761 = vpack.c.bf16 %v753, %v753
        %v762 = vld [vmem:[%s4] sm:$0xf]
        %v763 = vld [vmem:[%s4 + $0x4] sm:$0xf]
        %v764 = vld [vmem:[%s4 + $0x8] sm:$0xf]
        %v765 = vld [vmem:[%s4 + $0xc] sm:$0xf]
        %v770 = vunpack.c.l.b16 %v762
        %v771 = vunpack.c.l.b16 %v763
        %v772 = vunpack.c.l.b16 %v764
        %v773 = vunpack.c.l.b16 %v765
        %v774 = vpack.c.b16 %v771, %v770
        %v775 = vpack.c.b16 %v773, %v772
        %v777 = vsel %vm467, %v774, 0
        %v780 = vsel %vm467, %v775, 0
        %782 = vmatprep.subr.bf16.mxu0 0
        %783 = vmatpush1.bf16.msra.mxu0 0
        %784 = vmatprep.subr.bf16.mxu0 0
        %785 = vmatpush1.bf16.msra.mxu0 0
        %786 = vmatprep.subr.bf16.mxu0 0
        %787 = vmatpush1.bf16.msra.mxu0 0
        %788 = vmatprep.subr.bf16.mxu0 0
        %789 = vmatpush1.bf16.msra.mxu0 0
        %790 = vmatprep.subr.bf16.mxu0 0
        %791 = vmatpush1.bf16.msra.mxu0 0
        %792 = vmatprep.subr.bf16.mxu0 0
        %793 = vmatpush1.bf16.msra.mxu0 0
        %794 = vmatprep.subr.bf16.mxu0 0
        %795 = vmatpush1.bf16.msra.mxu0 %v530
        %796 = vmatprep.subr.bf16.mxu0 0
        %797 = vmatpush1.bf16.msra.mxu0 %v529
        %798 = vmatprep.subr.bf16.mxu0 0
        %799 = vmatpush2.bf16.msra.mxu0 0
        %800 = vmatprep.subr.bf16.mxu0 0
        %801 = vmatpush2.bf16.msra.mxu0 0
        %802 = vmatprep.subr.bf16.mxu0 0
        %803 = vmatpush2.bf16.msra.mxu0 0
        %804 = vmatprep.subr.bf16.mxu0 0
        %805 = vmatpush2.bf16.msra.mxu0 0
        %806 = vmatprep.subr.bf16.mxu0 0
        %807 = vmatpush2.bf16.msra.mxu0 0
        %808 = vmatprep.subr.bf16.mxu0 0
        %809 = vmatpush2.bf16.msra.mxu0 0
        %810 = vmatprep.subr.bf16.mxu0 0
        %811 = vmatpush2.bf16.msra.mxu0 0
        %812 = vmatprep.subr.bf16.mxu0 0
        %813 = vmatpush2.bf16.msra.mxu0 0
        %814 = vmatprep.mubr.bf16.mxu0 0
        %815 = vmatmul.mubr.bf16.gmra.mxu0 %v777
        %v816 = vpop.f32.mrf.mxu0
        %v817 = vadd.f32 0.0, %v816
        %v818 = vpop.f32.mrf.mxu0
        %v819 = vpop.f32.mrf.mxu0
        %v820 = vadd.f32 0.0, %v819
        %v821 = vpop.f32.mrf.mxu0
        %822 = vmatprep.mubr.bf16.mxu0 0
        %823 = vmatmul.mubr.bf16.gmra.mxu0 %v780
        %v824 = vpop.f32.mrf.mxu0
        %v825 = vadd.f32 0.0, %v824
        %v826 = vpop.f32.mrf.mxu0
        %v827 = vpop.f32.mrf.mxu0
        %v828 = vadd.f32 0.0, %v827
        %v829 = vpop.f32.mrf.mxu0
        %830 = vdwg.mxu0
        %v831 = vld [vmem:[%s5] sm:$0xf]
        %v832 = vld [vmem:[%s5 + $0x4] sm:$0xf]
        %v833 = vld [vmem:[%s5 + $0x8] sm:$0xf]
        %v834 = vld [vmem:[%s5 + $0xc] sm:$0xf]
        %v839 = vunpack.c.l.b16 %v831
        %v840 = vunpack.c.l.b16 %v832
        %v841 = vunpack.c.l.b16 %v833
        %v842 = vunpack.c.l.b16 %v834
        %v843 = vpack.c.b16 %v840, %v839
        %v844 = vpack.c.b16 %v842, %v841
        %v846 = vsel %vm467, %v843, 0
        %v849 = vsel %vm467, %v844, 0
        %851 = vmatprep.subr.bf16.mxu0 0
        %852 = vmatpush1.bf16.msra.mxu0 0
        %853 = vmatprep.subr.bf16.mxu0 0
        %854 = vmatpush1.bf16.msra.mxu0 0
        %855 = vmatprep.subr.bf16.mxu0 0
        %856 = vmatpush1.bf16.msra.mxu0 0
        %857 = vmatprep.subr.bf16.mxu0 0
        %858 = vmatpush1.bf16.msra.mxu0 0
        %859 = vmatprep.subr.bf16.mxu0 0
        %860 = vmatpush1.bf16.msra.mxu0 0
        %861 = vmatprep.subr.bf16.mxu0 0
        %862 = vmatpush1.bf16.msra.mxu0 0
        %863 = vmatprep.subr.bf16.mxu0 0
        %864 = vmatpush1.bf16.msra.mxu0 %v530
        %865 = vmatprep.subr.bf16.mxu0 0
        %866 = vmatpush1.bf16.msra.mxu0 %v529
        %867 = vmatprep.subr.bf16.mxu0 0
        %868 = vmatpush2.bf16.msra.mxu0 0
        %869 = vmatprep.subr.bf16.mxu0 0
        %870 = vmatpush2.bf16.msra.mxu0 0
        %871 = vmatprep.subr.bf16.mxu0 0
        %872 = vmatpush2.bf16.msra.mxu0 0
        %873 = vmatprep.subr.bf16.mxu0 0
        %874 = vmatpush2.bf16.msra.mxu0 0
        %875 = vmatprep.subr.bf16.mxu0 0
        %876 = vmatpush2.bf16.msra.mxu0 0
        %877 = vmatprep.subr.bf16.mxu0 0
        %878 = vmatpush2.bf16.msra.mxu0 0
        %879 = vmatprep.subr.bf16.mxu0 0
        %880 = vmatpush2.bf16.msra.mxu0 0
        %881 = vmatprep.subr.bf16.mxu0 0
        %882 = vmatpush2.bf16.msra.mxu0 0
        %883 = vmatprep.mubr.bf16.mxu0 0
        %884 = vmatmul.mubr.bf16.gmra.mxu0 %v846
        %v885 = vpop.f32.mrf.mxu0
        %v886 = vadd.f32 0.0, %v885
        %v887 = vpop.f32.mrf.mxu0
        %v888 = vpop.f32.mrf.mxu0
        %v889 = vadd.f32 0.0, %v888
        %v890 = vpop.f32.mrf.mxu0
        %891 = vmatprep.mubr.bf16.mxu0 0
        %892 = vmatmul.mubr.bf16.gmra.mxu0 %v849
        %v893 = vpop.f32.mrf.mxu0
        %v894 = vadd.f32 0.0, %v893
        %v895 = vpop.f32.mrf.mxu0
        %v896 = vpop.f32.mrf.mxu0
        %v897 = vadd.f32 0.0, %v896
        %v898 = vpop.f32.mrf.mxu0
        %899 = vdwg.mxu0
        %v900 = vpack.c.bf16 %v817, %v817
        %v901 = vpack.c.bf16 %v820, %v820
        %v902 = vpack.c.bf16 %v825, %v825
        %v903 = vpack.c.bf16 %v828, %v828
        %v904 = vpack.c.bf16 %v886, %v886
        %v905 = vpack.c.bf16 %v889, %v889
        %v906 = vpack.c.bf16 %v894, %v894
        %v907 = vpack.c.bf16 %v897, %v897
        %vm908 = vcmask 64512
        %v910 = vsel %vm908, %v758, 0
        %vm912 = vcmask 1043456
        %v914 = vsel %vm912, %v900, 0
        %916 = vmatprep.subr.bf16.mxu0 0
        %917 = vmatpush1.bf16.msra.mxu0 0
        %918 = vmatprep.subr.bf16.mxu0 0
        %919 = vmatpush1.bf16.msra.mxu0 0
        %920 = vmatprep.subr.bf16.mxu0 0
        %921 = vmatpush1.bf16.msra.mxu0 0
        %922 = vmatprep.subr.bf16.mxu0 0
        %923 = vmatpush1.bf16.msra.mxu0 0
        %924 = vmatprep.subr.bf16.mxu0 0
        %925 = vmatpush1.bf16.msra.mxu0 0
        %926 = vmatprep.subr.bf16.mxu0 0
        %927 = vmatpush1.bf16.msra.mxu0 0
        %928 = vmatprep.subr.bf16.mxu0 0
        %929 = vmatpush1.bf16.msra.mxu0 0
        %930 = vmatprep.subr.bf16.mxu0 0
        %931 = vmatpush1.bf16.msra.mxu0 %v914
        %932 = vmatprep.subr.bf16.mxu0 0
        %933 = vmatpush2.bf16.msra.mxu0 0
        %934 = vmatprep.subr.bf16.mxu0 0
        %935 = vmatpush2.bf16.msra.mxu0 0
        %936 = vmatprep.subr.bf16.mxu0 0
        %937 = vmatpush2.bf16.msra.mxu0 0
        %938 = vmatprep.subr.bf16.mxu0 0
        %939 = vmatpush2.bf16.msra.mxu0 0
        %940 = vmatprep.subr.bf16.mxu0 0
        %941 = vmatpush2.bf16.msra.mxu0 0
        %942 = vmatprep.subr.bf16.mxu0 0
        %943 = vmatpush2.bf16.msra.mxu0 0
        %944 = vmatprep.subr.bf16.mxu0 0
        %945 = vmatpush2.bf16.msra.mxu0 0
        %946 = vmatprep.subr.bf16.mxu0 0
        %947 = vmatpush2.bf16.msra.mxu0 0
        %948 = vmatprep.mubr.bf16.mxu0 0
        %949 = vmatmul.mubr.bf16.gmra.mxu0 %v910
        %v950 = vpop.f32.mrf.mxu0
        %v951 = vadd.f32 0.0, %v950
        %v952 = vpop.f32.mrf.mxu0
        %v953 = vpop.f32.mrf.mxu0
        %v954 = vpop.f32.mrf.mxu0
        %955 = vdwg.mxu0
        %v957 = vsel %vm908, %v759, 0
        %v960 = vsel %vm912, %v901, 0
        %962 = vmatprep.subr.bf16.mxu0 0
        %963 = vmatpush1.bf16.msra.mxu0 0
        %964 = vmatprep.subr.bf16.mxu0 0
        %965 = vmatpush1.bf16.msra.mxu0 0
        %966 = vmatprep.subr.bf16.mxu0 0
        %967 = vmatpush1.bf16.msra.mxu0 0
        %968 = vmatprep.subr.bf16.mxu0 0
        %969 = vmatpush1.bf16.msra.mxu0 0
        %970 = vmatprep.subr.bf16.mxu0 0
        %971 = vmatpush1.bf16.msra.mxu0 0
        %972 = vmatprep.subr.bf16.mxu0 0
        %973 = vmatpush1.bf16.msra.mxu0 0
        %974 = vmatprep.subr.bf16.mxu0 0
        %975 = vmatpush1.bf16.msra.mxu0 0
        %976 = vmatprep.subr.bf16.mxu0 0
        %977 = vmatpush1.bf16.msra.mxu0 %v960
        %978 = vmatprep.subr.bf16.mxu0 0
        %979 = vmatpush2.bf16.msra.mxu0 0
        %980 = vmatprep.subr.bf16.mxu0 0
        %981 = vmatpush2.bf16.msra.mxu0 0
        %982 = vmatprep.subr.bf16.mxu0 0
        %983 = vmatpush2.bf16.msra.mxu0 0
        %984 = vmatprep.subr.bf16.mxu0 0
        %985 = vmatpush2.bf16.msra.mxu0 0
        %986 = vmatprep.subr.bf16.mxu0 0
        %987 = vmatpush2.bf16.msra.mxu0 0
        %988 = vmatprep.subr.bf16.mxu0 0
        %989 = vmatpush2.bf16.msra.mxu0 0
        %990 = vmatprep.subr.bf16.mxu0 0
        %991 = vmatpush2.bf16.msra.mxu0 0
        %992 = vmatprep.subr.bf16.mxu0 0
        %993 = vmatpush2.bf16.msra.mxu0 0
        %994 = vmatprep.mubr.bf16.mxu0 0
        %995 = vmatmul.mubr.bf16.gmra.mxu0 %v957
        %v996 = vpop.f32.mrf.mxu0
        %v997 = vadd.f32 0.0, %v996
        %v998 = vpop.f32.mrf.mxu0
        %v999 = vpop.f32.mrf.mxu0
        %v1000 = vpop.f32.mrf.mxu0
        %1001 = vdwg.mxu0
        %v1003 = vsel %vm908, %v760, 0
        %v1006 = vsel %vm912, %v902, 0
        %1008 = vmatprep.subr.bf16.mxu0 0
        %1009 = vmatpush1.bf16.msra.mxu0 0
        %1010 = vmatprep.subr.bf16.mxu0 0
        %1011 = vmatpush1.bf16.msra.mxu0 0
        %1012 = vmatprep.subr.bf16.mxu0 0
        %1013 = vmatpush1.bf16.msra.mxu0 0
        %1014 = vmatprep.subr.bf16.mxu0 0
        %1015 = vmatpush1.bf16.msra.mxu0 0
        %1016 = vmatprep.subr.bf16.mxu0 0
        %1017 = vmatpush1.bf16.msra.mxu0 0
        %1018 = vmatprep.subr.bf16.mxu0 0
        %1019 = vmatpush1.bf16.msra.mxu0 0
        %1020 = vmatprep.subr.bf16.mxu0 0
        %1021 = vmatpush1.bf16.msra.mxu0 0
        %1022 = vmatprep.subr.bf16.mxu0 0
        %1023 = vmatpush1.bf16.msra.mxu0 %v1006
        %1024 = vmatprep.subr.bf16.mxu0 0
        %1025 = vmatpush2.bf16.msra.mxu0 0
        %1026 = vmatprep.subr.bf16.mxu0 0
        %1027 = vmatpush2.bf16.msra.mxu0 0
        %1028 = vmatprep.subr.bf16.mxu0 0
        %1029 = vmatpush2.bf16.msra.mxu0 0
        %1030 = vmatprep.subr.bf16.mxu0 0
        %1031 = vmatpush2.bf16.msra.mxu0 0
        %1032 = vmatprep.subr.bf16.mxu0 0
        %1033 = vmatpush2.bf16.msra.mxu0 0
        %1034 = vmatprep.subr.bf16.mxu0 0
        %1035 = vmatpush2.bf16.msra.mxu0 0
        %1036 = vmatprep.subr.bf16.mxu0 0
        %1037 = vmatpush2.bf16.msra.mxu0 0
        %1038 = vmatprep.subr.bf16.mxu0 0
        %1039 = vmatpush2.bf16.msra.mxu0 0
        %1040 = vmatprep.mubr.bf16.mxu0 0
        %1041 = vmatmul.mubr.bf16.gmra.mxu0 %v1003
        %v1042 = vpop.f32.mrf.mxu0
        %v1043 = vadd.f32 0.0, %v1042
        %v1044 = vpop.f32.mrf.mxu0
        %v1045 = vpop.f32.mrf.mxu0
        %v1046 = vpop.f32.mrf.mxu0
        %1047 = vdwg.mxu0
        %v1049 = vsel %vm908, %v761, 0
        %v1052 = vsel %vm912, %v903, 0
        %1054 = vmatprep.subr.bf16.mxu0 0
        %1055 = vmatpush1.bf16.msra.mxu0 0
        %1056 = vmatprep.subr.bf16.mxu0 0
        %1057 = vmatpush1.bf16.msra.mxu0 0
        %1058 = vmatprep.subr.bf16.mxu0 0
        %1059 = vmatpush1.bf16.msra.mxu0 0
        %1060 = vmatprep.subr.bf16.mxu0 0
        %1061 = vmatpush1.bf16.msra.mxu0 0
        %1062 = vmatprep.subr.bf16.mxu0 0
        %1063 = vmatpush1.bf16.msra.mxu0 0
        %1064 = vmatprep.subr.bf16.mxu0 0
        %1065 = vmatpush1.bf16.msra.mxu0 0
        %1066 = vmatprep.subr.bf16.mxu0 0
        %1067 = vmatpush1.bf16.msra.mxu0 0
        %1068 = vmatprep.subr.bf16.mxu0 0
        %1069 = vmatpush1.bf16.msra.mxu0 %v1052
        %1070 = vmatprep.subr.bf16.mxu0 0
        %1071 = vmatpush2.bf16.msra.mxu0 0
        %1072 = vmatprep.subr.bf16.mxu0 0
        %1073 = vmatpush2.bf16.msra.mxu0 0
        %1074 = vmatprep.subr.bf16.mxu0 0
        %1075 = vmatpush2.bf16.msra.mxu0 0
        %1076 = vmatprep.subr.bf16.mxu0 0
        %1077 = vmatpush2.bf16.msra.mxu0 0
        %1078 = vmatprep.subr.bf16.mxu0 0
        %1079 = vmatpush2.bf16.msra.mxu0 0
        %1080 = vmatprep.subr.bf16.mxu0 0
        %1081 = vmatpush2.bf16.msra.mxu0 0
        %1082 = vmatprep.subr.bf16.mxu0 0
        %1083 = vmatpush2.bf16.msra.mxu0 0
        %1084 = vmatprep.subr.bf16.mxu0 0
        %1085 = vmatpush2.bf16.msra.mxu0 0
        %1086 = vmatprep.mubr.bf16.mxu0 0
        %1087 = vmatmul.mubr.bf16.gmra.mxu0 %v1049
        %v1088 = vpop.f32.mrf.mxu0
        %v1089 = vadd.f32 0.0, %v1088
        %v1090 = vpop.f32.mrf.mxu0
        %v1091 = vpop.f32.mrf.mxu0
        %v1092 = vpop.f32.mrf.mxu0
        %1093 = vdwg.mxu0
        %v1094 = vsel %vm908, %v951, -inf
        %1095 = vmax.xlane.f32.xlu0 %v1094
        %v1096 = vpop.xlane.xlu0 %1095
        %v1097 = vsel %vm908, %v997, -inf
        %1098 = vmax.xlane.f32.xlu0 %v1097
        %v1099 = vpop.xlane.xlu0 %1098
        %v1100 = vsel %vm908, %v1043, -inf
        %1101 = vmax.xlane.f32.xlu0 %v1100
        %v1102 = vpop.xlane.xlu0 %1101
        %v1103 = vsel %vm908, %v1089, -inf
        %1104 = vmax.xlane.f32.xlu0 %v1103
        %v1105 = vpop.xlane.xlu0 %1104
        %v1106 = vsub.f32 %v951, %v1096
        %v1107 = vsub.f32 %v997, %v1099
        %v1108 = vsub.f32 %v1043, %v1102
        %v1109 = vsub.f32 %v1089, %v1105
        %v1110 = vmul.f32 %v1106, 1.442695
        %v1111 = vpow.pop %v1110
        %v1112 = vmul.f32 %v1107, 1.442695
        %v1113 = vpow.pop %v1112
        %v1114 = vmul.f32 %v1108, 1.442695
        %v1115 = vpow.pop %v1114
        %v1116 = vmul.f32 %v1109, 1.442695
        %v1117 = vpow.pop %v1116
        %v1118 = vsel %vm908, %v1111, 0.0
        %1119 = vadd.xlane.f32.xlu0 %v1118
        %v1120 = vpop.xlane.xlu0 %1119
        %v1121 = vsel %vm908, %v1113, 0.0
        %1122 = vadd.xlane.f32.xlu0 %v1121
        %v1123 = vpop.xlane.xlu0 %1122
        %v1124 = vsel %vm908, %v1115, 0.0
        %1125 = vadd.xlane.f32.xlu0 %v1124
        %v1126 = vpop.xlane.xlu0 %1125
        %v1127 = vsel %vm908, %v1117, 0.0
        %1128 = vadd.xlane.f32.xlu0 %v1127
        %v1129 = vpop.xlane.xlu0 %1128
        %v1130 = vrcp.pop %v1120
        %v1131 = vrcp.pop %v1123
        %v1132 = vrcp.pop %v1126
        %v1133 = vrcp.pop %v1129
        %v1134 = vmul.f32 %v1111, %v1130
        %v1135 = vmul.f32 %v1113, %v1131
        %v1136 = vmul.f32 %v1115, %v1132
        %v1137 = vmul.f32 %v1117, %v1133
        %v1138 = vpack.c.bf16 %v1134, %v1134
        %v1139 = vpack.c.bf16 %v1135, %v1135
        %v1140 = vpack.c.bf16 %v1136, %v1136
        %v1141 = vpack.c.bf16 %v1137, %v1137
        %v1143 = vsel %vm908, %v904, 0
        %v1146 = vsel %vm908, %v1138, 0
        %1148 = vmatprep.subr.bf16.mxu0 0
        %1149 = vmatpush1.bf16.xpose.msra.mxu0 0
        %1150 = vmatprep.subr.bf16.mxu0 0
        %1151 = vmatpush1.bf16.xpose.msra.mxu0 0
        %1152 = vmatprep.subr.bf16.mxu0 0
        %1153 = vmatpush1.bf16.xpose.msra.mxu0 0
        %1154 = vmatprep.subr.bf16.mxu0 0
        %1155 = vmatpush1.bf16.xpose.msra.mxu0 0
        %1156 = vmatprep.subr.bf16.mxu0 0
        %1157 = vmatpush1.bf16.xpose.msra.mxu0 0
        %1158 = vmatprep.subr.bf16.mxu0 0
        %1159 = vmatpush1.bf16.xpose.msra.mxu0 0
        %1160 = vmatprep.subr.bf16.mxu0 0
        %1161 = vmatpush1.bf16.xpose.msra.mxu0 0
        %1162 = vmatprep.subr.bf16.mxu0 0
        %1163 = vmatpush1.bf16.xpose.msra.mxu0 %v1146
        %1164 = vmatprep.subr.bf16.mxu0 0
        %1165 = vmatpush2.bf16.xpose.msra.mxu0 0
        %1166 = vmatprep.subr.bf16.mxu0 0
        %1167 = vmatpush2.bf16.xpose.msra.mxu0 0
        %1168 = vmatprep.subr.bf16.mxu0 0
        %1169 = vmatpush2.bf16.xpose.msra.mxu0 0
        %1170 = vmatprep.subr.bf16.mxu0 0
        %1171 = vmatpush2.bf16.xpose.msra.mxu0 0
        %1172 = vmatprep.subr.bf16.mxu0 0
        %1173 = vmatpush2.bf16.xpose.msra.mxu0 0
        %1174 = vmatprep.subr.bf16.mxu0 0
        %1175 = vmatpush2.bf16.xpose.msra.mxu0 0
        %1176 = vmatprep.subr.bf16.mxu0 0
        %1177 = vmatpush2.bf16.xpose.msra.mxu0 0
        %1178 = vmatprep.subr.bf16.mxu0 0
        %1179 = vmatpush2.bf16.xpose.msra.mxu0 0
        %1180 = vmatprep.mubr.bf16.mxu0 0
        %1181 = vmatmul.mubr.bf16.gmra.mxu0 %v1143
        %v1182 = vpop.f32.mrf.mxu0
        %v1183 = vadd.f32 0.0, %v1182
        %v1184 = vpop.f32.mrf.mxu0
        %v1185 = vpop.f32.mrf.mxu0
        %v1186 = vpop.f32.mrf.mxu0
        %1187 = vdwg.mxu0
        %v1189 = vsel %vm908, %v905, 0
        %v1192 = vsel %vm908, %v1139, 0
        %1194 = vmatprep.subr.bf16.mxu0 0
        %1195 = vmatpush1.bf16.xpose.msra.mxu0 0
        %1196 = vmatprep.subr.bf16.mxu0 0
        %1197 = vmatpush1.bf16.xpose.msra.mxu0 0
        %1198 = vmatprep.subr.bf16.mxu0 0
        %1199 = vmatpush1.bf16.xpose.msra.mxu0 0
        %1200 = vmatprep.subr.bf16.mxu0 0
        %1201 = vmatpush1.bf16.xpose.msra.mxu0 0
        %1202 = vmatprep.subr.bf16.mxu0 0
        %1203 = vmatpush1.bf16.xpose.msra.mxu0 0
        %1204 = vmatprep.subr.bf16.mxu0 0
        %1205 = vmatpush1.bf16.xpose.msra.mxu0 0
        %1206 = vmatprep.subr.bf16.mxu0 0
        %1207 = vmatpush1.bf16.xpose.msra.mxu0 0
        %1208 = vmatprep.subr.bf16.mxu0 0
        %1209 = vmatpush1.bf16.xpose.msra.mxu0 %v1192
        %1210 = vmatprep.subr.bf16.mxu0 0
        %1211 = vmatpush2.bf16.xpose.msra.mxu0 0
        %1212 = vmatprep.subr.bf16.mxu0 0
        %1213 = vmatpush2.bf16.xpose.msra.mxu0 0
        %1214 = vmatprep.subr.bf16.mxu0 0
        %1215 = vmatpush2.bf16.xpose.msra.mxu0 0
        %1216 = vmatprep.subr.bf16.mxu0 0
        %1217 = vmatpush2.bf16.xpose.msra.mxu0 0
        %1218 = vmatprep.subr.bf16.mxu0 0
        %1219 = vmatpush2.bf16.xpose.msra.mxu0 0
        %1220 = vmatprep.subr.bf16.mxu0 0
        %1221 = vmatpush2.bf16.xpose.msra.mxu0 0
        %1222 = vmatprep.subr.bf16.mxu0 0
        %1223 = vmatpush2.bf16.xpose.msra.mxu0 0
        %1224 = vmatprep.subr.bf16.mxu0 0
        %1225 = vmatpush2.bf16.xpose.msra.mxu0 0
        %1226 = vmatprep.mubr.bf16.mxu0 0
        %1227 = vmatmul.mubr.bf16.gmra.mxu0 %v1189
        %v1228 = vpop.f32.mrf.mxu0
        %v1229 = vadd.f32 0.0, %v1228
        %v1230 = vpop.f32.mrf.mxu0
        %v1231 = vpop.f32.mrf.mxu0
        %v1232 = vpop.f32.mrf.mxu0
        %1233 = vdwg.mxu0
        %v1235 = vsel %vm908, %v906, 0
        %v1238 = vsel %vm908, %v1140, 0
        %1240 = vmatprep.subr.bf16.mxu0 0
        %1241 = vmatpush1.bf16.xpose.msra.mxu0 0
        %1242 = vmatprep.subr.bf16.mxu0 0
        %1243 = vmatpush1.bf16.xpose.msra.mxu0 0
        %1244 = vmatprep.subr.bf16.mxu0 0
        %1245 = vmatpush1.bf16.xpose.msra.mxu0 0
        %1246 = vmatprep.subr.bf16.mxu0 0
        %1247 = vmatpush1.bf16.xpose.msra.mxu0 0
        %1248 = vmatprep.subr.bf16.mxu0 0
        %1249 = vmatpush1.bf16.xpose.msra.mxu0 0
        %1250 = vmatprep.subr.bf16.mxu0 0
        %1251 = vmatpush1.bf16.xpose.msra.mxu0 0
        %1252 = vmatprep.subr.bf16.mxu0 0
        %1253 = vmatpush1.bf16.xpose.msra.mxu0 0
        %1254 = vmatprep.subr.bf16.mxu0 0
        %1255 = vmatpush1.bf16.xpose.msra.mxu0 %v1238
        %1256 = vmatprep.subr.bf16.mxu0 0
        %1257 = vmatpush2.bf16.xpose.msra.mxu0 0
        %1258 = vmatprep.subr.bf16.mxu0 0
        %1259 = vmatpush2.bf16.xpose.msra.mxu0 0
        %1260 = vmatprep.subr.bf16.mxu0 0
        %1261 = vmatpush2.bf16.xpose.msra.mxu0 0
        %1262 = vmatprep.subr.bf16.mxu0 0
        %1263 = vmatpush2.bf16.xpose.msra.mxu0 0
        %1264 = vmatprep.subr.bf16.mxu0 0
        %1265 = vmatpush2.bf16.xpose.msra.mxu0 0
        %1266 = vmatprep.subr.bf16.mxu0 0
        %1267 = vmatpush2.bf16.xpose.msra.mxu0 0
        %1268 = vmatprep.subr.bf16.mxu0 0
        %1269 = vmatpush2.bf16.xpose.msra.mxu0 0
        %1270 = vmatprep.subr.bf16.mxu0 0
        %1271 = vmatpush2.bf16.xpose.msra.mxu0 0
        %1272 = vmatprep.mubr.bf16.mxu0 0
        %1273 = vmatmul.mubr.bf16.gmra.mxu0 %v1235
        %v1274 = vpop.f32.mrf.mxu0
        %v1275 = vadd.f32 0.0, %v1274
        %v1276 = vpop.f32.mrf.mxu0
        %v1277 = vpop.f32.mrf.mxu0
        %v1278 = vpop.f32.mrf.mxu0
        %1279 = vdwg.mxu0
        %v1281 = vsel %vm908, %v907, 0
        %v1284 = vsel %vm908, %v1141, 0
        %1286 = vmatprep.subr.bf16.mxu0 0
        %1287 = vmatpush1.bf16.xpose.msra.mxu0 0
        %1288 = vmatprep.subr.bf16.mxu0 0
        %1289 = vmatpush1.bf16.xpose.msra.mxu0 0
        %1290 = vmatprep.subr.bf16.mxu0 0
        %1291 = vmatpush1.bf16.xpose.msra.mxu0 0
        %1292 = vmatprep.subr.bf16.mxu0 0
        %1293 = vmatpush1.bf16.xpose.msra.mxu0 0
        %1294 = vmatprep.subr.bf16.mxu0 0
        %1295 = vmatpush1.bf16.xpose.msra.mxu0 0
        %1296 = vmatprep.subr.bf16.mxu0 0
        %1297 = vmatpush1.bf16.xpose.msra.mxu0 0
        %1298 = vmatprep.subr.bf16.mxu0 0
        %1299 = vmatpush1.bf16.xpose.msra.mxu0 0
        %1300 = vmatprep.subr.bf16.mxu0 0
        %1301 = vmatpush1.bf16.xpose.msra.mxu0 %v1284
        %1302 = vmatprep.subr.bf16.mxu0 0
        %1303 = vmatpush2.bf16.xpose.msra.mxu0 0
        %1304 = vmatprep.subr.bf16.mxu0 0
        %1305 = vmatpush2.bf16.xpose.msra.mxu0 0
        %1306 = vmatprep.subr.bf16.mxu0 0
        %1307 = vmatpush2.bf16.xpose.msra.mxu0 0
        %1308 = vmatprep.subr.bf16.mxu0 0
        %1309 = vmatpush2.bf16.xpose.msra.mxu0 0
        %1310 = vmatprep.subr.bf16.mxu0 0
        %1311 = vmatpush2.bf16.xpose.msra.mxu0 0
        %1312 = vmatprep.subr.bf16.mxu0 0
        %1313 = vmatpush2.bf16.xpose.msra.mxu0 0
        %1314 = vmatprep.subr.bf16.mxu0 0
        %1315 = vmatpush2.bf16.xpose.msra.mxu0 0
        %1316 = vmatprep.subr.bf16.mxu0 0
        %1317 = vmatpush2.bf16.xpose.msra.mxu0 0
        %1318 = vmatprep.mubr.bf16.mxu0 0
        %1319 = vmatmul.mubr.bf16.gmra.mxu0 %v1281
        %v1320 = vpop.f32.mrf.mxu0
        %v1321 = vadd.f32 0.0, %v1320
        %v1322 = vpop.f32.mrf.mxu0
        %v1323 = vpop.f32.mrf.mxu0
        %v1324 = vpop.f32.mrf.mxu0
        %1325 = vdwg.mxu0
        %1326 = vxpose.xlu0.b32.start [1/16] %v1183, 128
        %1327 = vxpose.xlu0.b32.cont [2/16] %v1229, 128
        %1328 = vxpose.xlu0.b32.cont [3/16] %v1275, 128
        %1329 = vxpose.xlu0.b32.cont [4/16] %v1321, 128
        %1330 = vxpose.xlu0.b32.cont [5/16] 0.0, 128
        %1331 = vxpose.xlu0.b32.cont [6/16] 0.0, 128
        %1332 = vxpose.xlu0.b32.cont [7/16] 0.0, 128
        %1333 = vxpose.xlu0.b32.cont [8/16] 0.0, 128
        %1334 = vxpose.xlu0.b32.cont [9/16] 0.0, 128
        %1335 = vxpose.xlu0.b32.cont [10/16] 0.0, 128
        %1336 = vxpose.xlu0.b32.cont [11/16] 0.0, 128
        %1337 = vxpose.xlu0.b32.cont [12/16] 0.0, 128
        %1338 = vxpose.xlu0.b32.cont [13/16] 0.0, 128
        %1339 = vxpose.xlu0.b32.cont [14/16] 0.0, 128
        %1340 = vxpose.xlu0.b32.cont [15/16] 0.0, 128
        %1341 = vxpose.xlu0.b32.end [16/16] 0.0, 128
        %v1342 = vpop.trf.xlu0
        %v1343 = vpop.trf.xlu0
        %v1344 = vpop.trf.xlu0
        %v1345 = vpop.trf.xlu0
        %v1346 = vpop.trf.xlu0
        %v1347 = vpop.trf.xlu0
        %v1348 = vpop.trf.xlu0
        %v1349 = vpop.trf.xlu0
        %v1350 = vpop.trf.xlu0
        %v1351 = vpop.trf.xlu0
        %v1352 = vpop.trf.xlu0
        %v1353 = vpop.trf.xlu0
        %v1354 = vpop.trf.xlu0
        %v1355 = vpop.trf.xlu0
        %v1356 = vpop.trf.xlu0
        %v1357 = vpop.trf.xlu0
        %v1358 = vpack.c.bf16 %v1342, %v1342
        %v1359 = vld [vmem:[%s6] sm:$0xf]
        %v1360 = vld [vmem:[%s6 + $0x4] sm:$0xf]
        %v1361 = vld [vmem:[%s6 + $0x8] sm:$0xf]
        %v1362 = vld [vmem:[%s6 + $0xc] sm:$0xf]
        %v1363 = vld [vmem:[%s7] sm:$0x1]
        %v1365 = vlaneseq
        %v1366 = vshrl.u32 %v1365, 7
        %v1367 = vsub.s32 0, %v1366
        %v1368 = vrot.slane %v1363, %v1367
        %v1374 = vunpack.c.l.b16 %v1359
        %v1375 = vunpack.c.l.b16 %v1360
        %v1376 = vunpack.c.l.b16 %v1361
        %v1377 = vunpack.c.l.b16 %v1362
        %v1378 = vpack.c.b16 %v1375, %v1374
        %v1379 = vpack.c.b16 %v1377, %v1376
        %v1383 = vsel %vm467, %v1358, 0
        %1385 = vmatprep.subr.bf16.mxu0 0
        %1386 = vmatpush1.bf16.msra.mxu0 0
        %1387 = vmatprep.subr.bf16.mxu0 0
        %1388 = vmatpush1.bf16.msra.mxu0 0
        %1389 = vmatprep.subr.bf16.mxu0 0
        %1390 = vmatpush1.bf16.msra.mxu0 0
        %1391 = vmatprep.subr.bf16.mxu0 0
        %1392 = vmatpush1.bf16.msra.mxu0 0
        %1393 = vmatprep.subr.bf16.mxu0 0
        %1394 = vmatpush1.bf16.msra.mxu0 0
        %1395 = vmatprep.subr.bf16.mxu0 0
        %1396 = vmatpush1.bf16.msra.mxu0 0
        %1397 = vmatprep.subr.bf16.mxu0 0
        %1398 = vmatpush1.bf16.msra.mxu0 %v1379
        %1399 = vmatprep.subr.bf16.mxu0 0
        %1400 = vmatpush1.bf16.msra.mxu0 %v1378
        %1401 = vmatprep.subr.bf16.mxu0 0
        %1402 = vmatpush2.bf16.msra.mxu0 0
        %1403 = vmatprep.subr.bf16.mxu0 0
        %1404 = vmatpush2.bf16.msra.mxu0 0
        %1405 = vmatprep.subr.bf16.mxu0 0
        %1406 = vmatpush2.bf16.msra.mxu0 0
        %1407 = vmatprep.subr.bf16.mxu0 0
        %1408 = vmatpush2.bf16.msra.mxu0 0
        %1409 = vmatprep.subr.bf16.mxu0 0
        %1410 = vmatpush2.bf16.msra.mxu0 0
        %1411 = vmatprep.subr.bf16.mxu0 0
        %1412 = vmatpush2.bf16.msra.mxu0 0
        %1413 = vmatprep.subr.bf16.mxu0 0
        %1414 = vmatpush2.bf16.msra.mxu0 0
        %1415 = vmatprep.subr.bf16.mxu0 0
        %1416 = vmatpush2.bf16.msra.mxu0 0
        %1417 = vmatprep.mubr.bf16.mxu0 0
        %1418 = vmatmul.mubr.bf16.gmra.mxu0 %v1383
        %v1419 = vpop.f32.mrf.mxu0
        %v1420 = vadd.f32 %v1368, %v1419
        %v1421 = vpop.f32.mrf.mxu0
        %v1422 = vpop.f32.mrf.mxu0
        %v1423 = vpop.f32.mrf.mxu0
        %1424 = vdwg.mxu0
        %v1425 = vadd.f32 %v464, %v1420
        %v1426 = vld [vmem:[%s8] sm:$0x1]
        %v1427 = vld [vmem:[%s9] sm:$0x1]
        %v1428 = vsel %vm467, %v1425, 0.0
        %1429 = vadd.xlane.f32.xlu0 %v1428
        %v1430 = vpop.xlane.xlu0 %1429
        %v1431 = vmul.f32 %v1430, %v471
        %v1432 = vsub.f32 %v1425, %v1431
        %v1433 = vmul.f32 %v1432, %v1432
        %v1434 = vsel %vm467, %v1433, 0.0
        %1435 = vadd.xlane.f32.xlu0 %v1434
        %v1436 = vpop.xlane.xlu0 %1435
        %v1437 = vmul.f32 %v1436, %v471
        %v1438 = vadd.f32 %v1437, 1e-05
        %v1439 = vrsqrt.pop %v1438
        %v1440 = vmul.f32 %v1432, %v1439
        %v1442 = vlaneseq
        %v1443 = vshrl.u32 %v1442, 7
        %v1444 = vsub.s32 0, %v1443
        %v1445 = vrot.slane %v1426, %v1444
        %v1447 = vmul.f32 %v1440, %v1445
        %v1449 = vlaneseq
        %v1450 = vshrl.u32 %v1449, 7
        %v1451 = vsub.s32 0, %v1450
        %v1452 = vrot.slane %v1427, %v1451
        %v1454 = vadd.f32 %v1447, %v1452
        %v1455 = vpack.c.bf16 %v1454, %v1454
        %v1456 = vld [vmem:[%s10] sm:$0xf]
        %v1457 = vld [vmem:[%s10 + $0x4] sm:$0xf]
        %v1458 = vld [vmem:[%s10 + $0x8] sm:$0xf]
        %v1459 = vld [vmem:[%s10 + $0xc] sm:$0xf]
        %v1460 = vld [vmem:[%s11] sm:$0x1]
        %v1462 = vlaneseq
        %v1463 = vshrl.u32 %v1462, 7
        %v1464 = vsub.s32 0, %v1463
        %v1465 = vrot.slane %v1460, %v1464
        %v1471 = vunpack.c.l.b16 %v1456
        %v1472 = vunpack.c.l.b16 %v1457
        %v1473 = vunpack.c.l.b16 %v1458
        %v1474 = vunpack.c.l.b16 %v1459
        %v1475 = vpack.c.b16 %v1472, %v1471
        %v1476 = vpack.c.b16 %v1474, %v1473
        %v1480 = vsel %vm467, %v1455, 0
        %1482 = vmatprep.subr.bf16.mxu0 0
        %1483 = vmatpush1.bf16.msra.mxu0 0
        %1484 = vmatprep.subr.bf16.mxu0 0
        %1485 = vmatpush1.bf16.msra.mxu0 0
        %1486 = vmatprep.subr.bf16.mxu0 0
        %1487 = vmatpush1.bf16.msra.mxu0 0
        %1488 = vmatprep.subr.bf16.mxu0 0
        %1489 = vmatpush1.bf16.msra.mxu0 0
        %1490 = vmatprep.subr.bf16.mxu0 0
        %1491 = vmatpush1.bf16.msra.mxu0 0
        %1492 = vmatprep.subr.bf16.mxu0 0
        %1493 = vmatpush1.bf16.msra.mxu0 0
        %1494 = vmatprep.subr.bf16.mxu0 0
        %1495 = vmatpush1.bf16.msra.mxu0 %v1476
        %1496 = vmatprep.subr.bf16.mxu0 0
        %1497 = vmatpush1.bf16.msra.mxu0 %v1475
        %1498 = vmatprep.subr.bf16.mxu0 0
        %1499 = vmatpush2.bf16.msra.mxu0 0
        %1500 = vmatprep.subr.bf16.mxu0 0
        %1501 = vmatpush2.bf16.msra.mxu0 0
        %1502 = vmatprep.subr.bf16.mxu0 0
        %1503 = vmatpush2.bf16.msra.mxu0 0
        %1504 = vmatprep.subr.bf16.mxu0 0
        %1505 = vmatpush2.bf16.msra.mxu0 0
        %1506 = vmatprep.subr.bf16.mxu0 0
        %1507 = vmatpush2.bf16.msra.mxu0 0
        %1508 = vmatprep.subr.bf16.mxu0 0
        %1509 = vmatpush2.bf16.msra.mxu0 0
        %1510 = vmatprep.subr.bf16.mxu0 0
        %1511 = vmatpush2.bf16.msra.mxu0 0
        %1512 = vmatprep.subr.bf16.mxu0 0
        %1513 = vmatpush2.bf16.msra.mxu0 0
        %1514 = vmatprep.mubr.bf16.mxu0 0
        %1515 = vmatmul.mubr.bf16.gmra.mxu0 %v1480
        %v1516 = vpop.f32.mrf.mxu0
        %v1517 = vadd.f32 %v1465, %v1516
        %v1518 = vpop.f32.mrf.mxu0
        %v1519 = vpop.f32.mrf.mxu0
        %v1520 = vpop.f32.mrf.mxu0
        %1521 = vdwg.mxu0
        %v1522 = vmul.f32 %v1517, 0.5
        %v1523 = vmul.f32 %v1517, 0.70710677
        %v1524 = vmax.f32 %v1523, -4.0
        %v1525 = vmin.f32 %v1524, 4.0
        %v1526 = vmul.f32 %v1525, %v1525
        %v1527 = vmul.f32 %v1526, -2.7261424e-10
        %v1528 = vadd.f32 %v1527, 2.7706815e-08
        %v1529 = vmul.f32 %v1528, %v1526
        %v1530 = vadd.f32 %v1529, -2.101024e-06
        %v1531 = vmul.f32 %v1530, %v1526
        %v1532 = vadd.f32 %v1531, -5.6925062e-05
        %v1533 = vmul.f32 %v1532, %v1526
        %v1534 = vadd.f32 %v1533, -0.00073499064
        %v1535 = vmul.f32 %v1534, %v1526
        %v1536 = vadd.f32 %v1535, -0.0029546
        %v1537 = vmul.f32 %v1536, %v1526
        %v1538 = vadd.f32 %v1537, -0.016096033
        %v1539 = vmul.f32 %v1538, %v1525
        %v1540 = vmul.f32 %v1526, -1.45660715e-05
        %v1541 = vadd.f32 %v1540, -0.00021337405
        %v1542 = vmul.f32 %v1541, %v1526
        %v1543 = vadd.f32 %v1542, -0.001682827
        %v1544 = vmul.f32 %v1543, %v1526
        %v1545 = vadd.f32 %v1544, -0.0073733293
        %v1546 = vmul.f32 %v1545, %v1526
        %v1547 = vadd.f32 %v1546, -0.014264739
        %v1548 = vrcp.pop %v1547
        %v1549 = vmul.f32 %v1547, %v1548
        %v1550 = vsub.f32 2.0, %v1549
        %v1551 = vmul.f32 %v1548, %v1550
        %v1552 = vmul.f32 %v1539, %v1551
        %v1553 = vadd.f32 %v1552, 1.0
        %v1554 = vmul.f32 %v1522, %v1553
        %v1555 = vpack.c.bf16 %v1554, %v1554
        %v1556 = vld [vmem:[%s12] sm:$0xf]
        %v1557 = vld [vmem:[%s12 + $0x4] sm:$0xf]
        %v1558 = vld [vmem:[%s12 + $0x8] sm:$0xf]
        %v1559 = vld [vmem:[%s12 + $0xc] sm:$0xf]
        %v1560 = vld [vmem:[%s12 + $0x10] sm:$0xf]
        %v1561 = vld [vmem:[%s12 + $0x14] sm:$0xf]
        %v1562 = vld [vmem:[%s12 + $0x18] sm:$0xf]
        %v1563 = vld [vmem:[%s12 + $0x1c] sm:$0xf]
        %v1564 = vld [vmem:[%s12 + $0x20] sm:$0xf]
        %v1565 = vld [vmem:[%s12 + $0x24] sm:$0xf]
        %v1566 = vld [vmem:[%s12 + $0x28] sm:$0xf]
        %v1567 = vld [vmem:[%s12 + $0x2c] sm:$0xf]
        %v1568 = vld [vmem:[%s12 + $0x30] sm:$0xf]
        %v1569 = vld [vmem:[%s12 + $0x34] sm:$0xf]
        %v1570 = vld [vmem:[%s12 + $0x38] sm:$0xf]
        %v1571 = vld [vmem:[%s12 + $0x3c] sm:$0xf]
        %v1572 = vld [vmem:[%s13] sm:$0x1]
        %v1574 = vlaneseq
        %v1575 = vshrl.u32 %v1574, 7
        %v1576 = vsub.s32 0, %v1575
        %v1577 = vrot.slane %v1572, %v1576
        %v1595 = vunpack.c.l.b16 %v1556
        %v1596 = vunpack.c.l.b16 %v1557
        %v1597 = vunpack.c.l.b16 %v1558
        %v1598 = vunpack.c.l.b16 %v1559
        %v1599 = vunpack.c.l.b16 %v1560
        %v1600 = vunpack.c.l.b16 %v1561
        %v1601 = vunpack.c.l.b16 %v1562
        %v1602 = vunpack.c.l.b16 %v1563
        %v1603 = vunpack.c.l.b16 %v1564
        %v1604 = vunpack.c.l.b16 %v1565
        %v1605 = vunpack.c.l.b16 %v1566
        %v1606 = vunpack.c.l.b16 %v1567
        %v1607 = vunpack.c.l.b16 %v1568
        %v1608 = vunpack.c.l.b16 %v1569
        %v1609 = vunpack.c.l.b16 %v1570
        %v1610 = vunpack.c.l.b16 %v1571
        %v1611 = vpack.c.b16 %v1596, %v1595
        %v1612 = vpack.c.b16 %v1598, %v1597
        %v1613 = vpack.c.b16 %v1600, %v1599
        %v1614 = vpack.c.b16 %v1602, %v1601
        %v1615 = vpack.c.b16 %v1604, %v1603
        %v1616 = vpack.c.b16 %v1606, %v1605
        %v1617 = vpack.c.b16 %v1608, %v1607
        %v1618 = vpack.c.b16 %v1610, %v1609
        %1627 = vmatprep.subr.bf16.mxu0 0
        %1628 = vmatpush1.bf16.msra.mxu0 %v1618
        %1629 = vmatprep.subr.bf16.mxu0 0
        %1630 = vmatpush1.bf16.msra.mxu0 %v1617
        %1631 = vmatprep.subr.bf16.mxu0 0
        %1632 = vmatpush1.bf16.msra.mxu0 %v1616
        %1633 = vmatprep.subr.bf16.mxu0 0
        %1634 = vmatpush1.bf16.msra.mxu0 %v1615
        %1635 = vmatprep.subr.bf16.mxu0 0
        %1636 = vmatpush1.bf16.msra.mxu0 %v1614
        %1637 = vmatprep.subr.bf16.mxu0 0
        %1638 = vmatpush1.bf16.msra.mxu0 %v1613
        %1639 = vmatprep.subr.bf16.mxu0 0
        %1640 = vmatpush1.bf16.msra.mxu0 %v1612
        %1641 = vmatprep.subr.bf16.mxu0 0
        %1642 = vmatpush1.bf16.msra.mxu0 %v1611
        %1643 = vmatprep.subr.bf16.mxu0 0
        %1644 = vmatpush2.bf16.msra.mxu0 0
        %1645 = vmatprep.subr.bf16.mxu0 0
        %1646 = vmatpush2.bf16.msra.mxu0 0
        %1647 = vmatprep.subr.bf16.mxu0 0
        %1648 = vmatpush2.bf16.msra.mxu0 0
        %1649 = vmatprep.subr.bf16.mxu0 0
        %1650 = vmatpush2.bf16.msra.mxu0 0
        %1651 = vmatprep.subr.bf16.mxu0 0
        %1652 = vmatpush2.bf16.msra.mxu0 0
        %1653 = vmatprep.subr.bf16.mxu0 0
        %1654 = vmatpush2.bf16.msra.mxu0 0
        %1655 = vmatprep.subr.bf16.mxu0 0
        %1656 = vmatpush2.bf16.msra.mxu0 0
        %1657 = vmatprep.subr.bf16.mxu0 0
        %1658 = vmatpush2.bf16.msra.mxu0 0
        %1659 = vmatprep.mubr.bf16.mxu0 0
        %1660 = vmatmul.mubr.bf16.gmra.mxu0 %v1555
        %v1661 = vpop.f32.mrf.mxu0
        %v1662 = vadd.f32 %v1577, %v1661
        %v1663 = vpop.f32.mrf.mxu0
        %v1664 = vpop.f32.mrf.mxu0
        %v1665 = vpop.f32.mrf.mxu0
        %1666 = vdwg.mxu0
        %v1667 = vadd.f32 %v1425, %v1662
        %1668 = vst.msk [vmem:[%s458] sm:$0xff] %vm467, %v1667
        %s1669 = sand.u32 %s335, 1
        %s1670 = scalar_lea.sflag [#allocation3], %s1669
        %s1671 = sand.u32 %s335, 1
        %s1672 = smul.addr %s1671, 8
        %s1673 = scalar_lea.vmem [#allocation2], %s1672
        // Predicated region
        $region77: #{tpu_custom_call.1} parent=75 // pred_check
          %p1674 = pneg %p345
        $region78: #{tpu_custom_call.1} parent=75 // pred_check_branch
          %1676 = sbr.rel (%p1674) target = $region80
        $region79: #{tpu_custom_call.1} parent=75 // pred_region
          %s1678 = ssub.s32 128, 128
          %1679 = vsyncadd %s1670, %s1678
          %s1680 = smul.addr %s28, 128
          %s1681 = scalar_lea.hbm %s14, %s1680
          %s1683 = sshll.u32 %s1673, 4
          %s1684 = int_to_ptr.vmem [resolvable:$true] %s1683
          %1686 = dma.vmem_to_hbm [thread:$0]  %s1684, 128, %s1681, %s1670
        $region80: #{tpu_custom_call.1} parent=75 // pred_fallthru
          _
      $region76: #{tpu_custom_call.1} parent=5 // pred_fallthru
        _
      %p1687 = scmp.le.s32.totalorder 2, %s23
      // Predicated region
      $region81: #{tpu_custom_call.1} parent=5 // pred_check
        %p1688 = pneg %p1687
      $region82: #{tpu_custom_call.1} parent=5 // pred_check_branch
        %1690 = sbr.rel (%p1688) target = $region84
      $region83: #{tpu_custom_call.1} parent=5 // pred_region
        %s1691 = ssub.s32 %s23, 2
        // Predicated region
        $region85: #{tpu_custom_call.1} parent=83 // pred_check
          %p1692 = pneg %p351
        $region86: #{tpu_custom_call.1} parent=83 // pred_check_branch
          %1694 = sbr.rel (%p1692) target = $region88
        $region87: #{tpu_custom_call.1} parent=83 // pred_region
          %s1695 = sand.u32 %s336, 1
          %s1696 = scalar_lea.sflag [#allocation3], %s1695
          %s1697 = sand.u32 %s336, 1
          %s1698 = smul.addr %s1697, 8
          %s1699 = scalar_lea.vmem [#allocation2], %s1698
          %1700 = dma.done %s1696, 128
        $region88: #{tpu_custom_call.1} parent=83 // pred_fallthru
          _
      $region84: #{tpu_custom_call.1} parent=5 // pred_fallthru
        _
    $region6: #{tpu_custom_call.1} parent=1 // loop_footer
      %s27 = sadd.s32 1, %s23
    $region7: #{tpu_custom_call.1} parent=1 // loop_footer_branch
      %22 = sbr.rel target = $region3
    $region8: #{tpu_custom_call.1} parent=1 // loop_exit
      _
    %1701 = vsyncpa [#allocation3], 1
    %s1702 = scalar_lea.sflag [#allocation3], 1
    %1703 = vsyncpa %s1702, 1

</llo_original>
